<compile_context>
chip_gen: v7x
topology: tpu7x:2x2x1
jax: 0.10.0
libtpu: 0.0.40
codegen_flags: <defaults>
</compile_context>

<pallas_src>
import jax
import jax.numpy as jnp
from jax.experimental import pallas as pl
from jax.experimental.pallas import tpu as pltpu


def _fc_critic_kernel(x_ref, w1_ref, b1_ref, w2_ref, b2_ref, w3_ref, b3_ref,
                      o_ref):
    # Cast x in-kernel (VALU slot is free next to MXU-bound matmuls).
    x = x_ref[...].astype(jnp.bfloat16)
    # fc1 + ReLU   (bf16 x bf16 -> f32 accumulate; bias/ReLU in f32)
    h = jnp.dot(x, w1_ref[...],
                preferred_element_type=jnp.float32) + b1_ref[...]
    h = jnp.maximum(h, 0.0)
    # fc2 + ReLU
    h = jnp.dot(h.astype(jnp.bfloat16), w2_ref[...],
                preferred_element_type=jnp.float32) + b2_ref[...]
    h = jnp.maximum(h, 0.0)
    # fc3 (weights pre-padded to 128 lanes; only column 0 is real)
    o = jnp.dot(h.astype(jnp.bfloat16), w3_ref[...],
                preferred_element_type=jnp.float32) + b3_ref[...]
    o_ref[...] = o.astype(o_ref.dtype)


def prepare_fc_critic_params(params):
    """One-time weight prep: bf16 cast + fc3 lane-padding (hoisted out of the
    per-call forward path)."""
    w1, b1, w2, b2, w3, b3 = params
    OUT_PAD = 128
    w3p = (jnp.zeros((w3.shape[0], OUT_PAD), jnp.float32)
           .at[:, :1].set(w3)).astype(jnp.bfloat16)
    b3p = jnp.zeros((1, OUT_PAD), jnp.float32).at[:, :1].set(b3.reshape(1, -1))
    return (w1.astype(jnp.bfloat16), b1.reshape(1, -1).astype(jnp.float32),
            w2.astype(jnp.bfloat16), b2.reshape(1, -1).astype(jnp.float32),
            w3p, b3p)


def _round_up(v, m):
    return ((v + m - 1) // m) * m


def _resident_spec(shape):
    """Constant-index block: lives in VMEM for the whole grid. Request
    single-buffering (no point double-buffering a block that never changes);
    fall back silently if this JAX version lacks pipeline_mode."""
    idx_map = lambda i: (0,) * len(shape)
    try:
        return pl.BlockSpec(shape, idx_map,
                            pipeline_mode=pl.Buffered(buffer_count=1))
    except (TypeError, AttributeError):
        return pl.BlockSpec(shape, idx_map)


@jax.jit
def fc_critic_forward(image_batch, prepared_params):
    """image_batch: (B, C, H, W) float32 -> (B, 1) float32"""
    w1, b1, w2, b2, w3p, b3p = prepared_params
    B = image_batch.shape[0]
    D, H1 = w1.shape
    H2 = w2.shape[1]
    OUT_PAD = w3p.shape[1]

    x = image_batch.reshape(B, -1).astype(jnp.float32)
    assert x.shape[1] == D

    # --- batch tiling ---------------------------------------------------
    # Multiple of 16 (bf16 sublane packing). Small batches: one tile.
    # Medium batches: split into >= 2 tiles so v7x's 2 TensorCores both run.
    # Large batches: 512-row tiles (multiple of 256 -> fills the MXU M dim,
    # amortizes the ~0.35 us per-grid-step pipeline overhead).
    B16 = _round_up(B, 16)
    if B16 <= 256:
        TB = B16
    elif B16 <= 1024:
        TB = _round_up(pl.cdiv(B16, 2), 16)
    else:
        TB = 512
    B_pad = _round_up(B16, TB)

    if B_pad != B:
        x = jnp.pad(x, ((0, B_pad - B), (0, 0)))

    grid = (B_pad // TB,)
    out = pl.pallas_call(
        _fc_critic_kernel,
        out_shape=jax.ShapeDtypeStruct((B_pad, OUT_PAD), jnp.float32),
        grid_spec=pltpu.PrefetchScalarGridSpec(
            num_scalar_prefetch=0,
            grid=grid,
            in_specs=[
                pl.BlockSpec((TB, D), lambda i: (i, 0)),   # x tiles stream (f32)
                _resident_spec((D, H1)),                   # weights / biases
                _resident_spec((1, H1)),                   # stay resident in
                _resident_spec((H1, H2)),                  # VMEM across the
                _resident_spec((1, H2)),                   # whole grid
                _resident_spec((H2, OUT_PAD)),
                _resident_spec((1, OUT_PAD)),
            ],
            out_specs=pl.BlockSpec((TB, OUT_PAD), lambda i: (i, 0)),
        ),
        compiler_params=pltpu.CompilerParams(
            dimension_semantics=("parallel",),   # megacore sharding on v7x
            vmem_limit_bytes=32 << 20,
        ),
    )(x, w1, b1, w2, b2, w3p, b3p)

    return out[:B, :1]


def init_fc_critic_params(key, image_size, channels, hidden=512):
    """Deterministic init mimicking nn.Linear default (U(-1/sqrt(fan_in), ...)).
    Weights stored as (in, out) = transpose of PyTorch's (out, in)."""
    D = image_size * image_size * channels
    ks = jax.random.split(key, 6)

    def lin(kw, kb, fan_in, fan_out):
        bound = 1.0 / (fan_in ** 0.5)
        w = jax.random.uniform(kw, (fan_in, fan_out), jnp.float32, -bound, bound)
        b = jax.random.uniform(kb, (fan_out,), jnp.float32, -bound, bound)
        return w, b

    w1, b1 = lin(ks[0], ks[1], D, hidden)
    w2, b2 = lin(ks[2], ks[3], hidden, hidden)
    w3, b3 = lin(ks[4], ks[5], hidden, 1)
    return (w1, b1, w2, b2, w3, b3)


if __name__ == "__main__":
    key = jax.random.PRNGKey(0)
    k_img, k_par = jax.random.split(key)

    BATCH, CHANNELS, IMAGE_SIZE = 2, 4, 16
    image_batch = jax.random.normal(
        k_img, (BATCH, CHANNELS, IMAGE_SIZE, IMAGE_SIZE), jnp.float32)

    params = init_fc_critic_params(k_par, IMAGE_SIZE, CHANNELS)
    prepared = prepare_fc_critic_params(params)

    scores = fc_critic_forward(image_batch, prepared)
    jax.block_until_ready(scores)
    assert scores.shape == (BATCH, 1)

    # Reference with the SAME bf16 casts / f32 accumulation (tight tolerance).
    w1, b1, w2, b2, w3, b3 = params
    xb = image_batch.reshape(BATCH, -1).astype(jnp.bfloat16)
    h = jnp.maximum(jnp.dot(xb, w1.astype(jnp.bfloat16),
                            preferred_element_type=jnp.float32) + b1, 0.0)
    h = jnp.maximum(jnp.dot(h.astype(jnp.bfloat16), w2.astype(jnp.bfloat16),
                            preferred_element_type=jnp.float32) + b2, 0.0)
    ref_bf16 = jnp.dot(h.astype(jnp.bfloat16), w3.astype(jnp.bfloat16),
                       preferred_element_type=jnp.float32) + b3
    assert jnp.allclose(scores, ref_bf16, atol=5e-3, rtol=5e-3)

    # Looser sanity check against the full-f32 reference (bf16 weight rounding).
    xf = image_batch.reshape(BATCH, -1)
    hf = jnp.maximum(xf @ w1 + b1, 0.0)
    hf = jnp.maximum(hf @ w2 + b2, 0.0)
    ref_f32 = hf @ w3 + b3
    assert jnp.allclose(scores, ref_f32, atol=1e-1, rtol=1e-1)

    print("KERNEL_OK")
</pallas_src>

<mosaic_0001>
module attributes {stable_mosaic.version = 11 : i64} {
  func.func @_fc_critic_kernel(%arg0: i32, %arg1: memref<16x1024xf32, #tpu.memory_space<vmem>>, %arg2: memref<1024x512xbf16, #tpu.memory_space<vmem>>, %arg3: memref<1x512xf32, #tpu.memory_space<vmem>>, %arg4: memref<512x512xbf16, #tpu.memory_space<vmem>>, %arg5: memref<1x512xf32, #tpu.memory_space<vmem>>, %arg6: memref<512x128xbf16, #tpu.memory_space<vmem>>, %arg7: memref<1x128xf32, #tpu.memory_space<vmem>>, %arg8: memref<16x128xf32, #tpu.memory_space<vmem>>) attributes {dimension_semantics = [#tpu.dimension_semantics<parallel>], iteration_bounds = array<i64: 1>, scalar_prefetch = 0 : i64, scratch_operands = 0 : i64, tpu.core_type = #tpu.core_type<tc>, window_params = [{transform_indices = @transform_0, window_bounds = array<i64: 16, 1024>}, {pipeline_mode = #tpu.pipeline_mode<synchronous>, transform_indices = @transform_1, window_bounds = array<i64: 1024, 512>}, {pipeline_mode = #tpu.pipeline_mode<synchronous>, transform_indices = @transform_2, window_bounds = array<i64: 1, 512>}, {pipeline_mode = #tpu.pipeline_mode<synchronous>, transform_indices = @transform_3, window_bounds = array<i64: 512, 512>}, {pipeline_mode = #tpu.pipeline_mode<synchronous>, transform_indices = @transform_4, window_bounds = array<i64: 1, 512>}, {pipeline_mode = #tpu.pipeline_mode<synchronous>, transform_indices = @transform_5, window_bounds = array<i64: 512, 128>}, {pipeline_mode = #tpu.pipeline_mode<synchronous>, transform_indices = @transform_6, window_bounds = array<i64: 1, 128>}, {transform_indices = @transform_7, window_bounds = array<i64: 16, 128>}]} {
    %c0 = arith.constant 0 : index
    %c0_0 = arith.constant 0 : index
    %0 = vector.load %arg1[%c0, %c0_0] : memref<16x1024xf32, #tpu.memory_space<vmem>>, vector<16x1024xf32>
    %1 = arith.truncf %0 : vector<16x1024xf32> to vector<16x1024xbf16>
    %c0_1 = arith.constant 0 : index
    %c0_2 = arith.constant 0 : index
    %2 = vector.load %arg2[%c0_1, %c0_2] : memref<1024x512xbf16, #tpu.memory_space<vmem>>, vector<1024x512xbf16>
    %cst = arith.constant dense<0.000000e+00> : vector<16x512xf32>
    %3 = tpu.matmul %1, %2, %cst {dimension_numbers = #tpu.dot_dimension_numbers<[1], [0], [0], [1], [0, 0, 1, 1], [], []>} : vector<16x1024xbf16>, vector<1024x512xbf16>, vector<16x512xf32> -> vector<16x512xf32>
    %c0_3 = arith.constant 0 : index
    %c0_4 = arith.constant 0 : index
    %4 = vector.load %arg3[%c0_3, %c0_4] : memref<1x512xf32, #tpu.memory_space<vmem>>, vector<1x512xf32>
    %5 = vector.broadcast %4 : vector<1x512xf32> to vector<16x512xf32>
    %6 = arith.addf %3, %5 : vector<16x512xf32>
    %cst_5 = arith.constant 0.000000e+00 : f32
    %7 = vector.broadcast %cst_5 : f32 to vector<16x512xf32>
    %8 = arith.maximumf %6, %7 : vector<16x512xf32>
    %9 = arith.truncf %8 : vector<16x512xf32> to vector<16x512xbf16>
    %c0_6 = arith.constant 0 : index
    %c0_7 = arith.constant 0 : index
    %10 = vector.load %arg4[%c0_6, %c0_7] : memref<512x512xbf16, #tpu.memory_space<vmem>>, vector<512x512xbf16>
    %cst_8 = arith.constant dense<0.000000e+00> : vector<16x512xf32>
    %11 = tpu.matmul %9, %10, %cst_8 {dimension_numbers = #tpu.dot_dimension_numbers<[1], [0], [0], [1], [0, 0, 1, 1], [], []>} : vector<16x512xbf16>, vector<512x512xbf16>, vector<16x512xf32> -> vector<16x512xf32>
    %c0_9 = arith.constant 0 : index
    %c0_10 = arith.constant 0 : index
    %12 = vector.load %arg5[%c0_9, %c0_10] : memref<1x512xf32, #tpu.memory_space<vmem>>, vector<1x512xf32>
    %13 = vector.broadcast %12 : vector<1x512xf32> to vector<16x512xf32>
    %14 = arith.addf %11, %13 : vector<16x512xf32>
    %cst_11 = arith.constant 0.000000e+00 : f32
    %15 = vector.broadcast %cst_11 : f32 to vector<16x512xf32>
    %16 = arith.maximumf %14, %15 : vector<16x512xf32>
    %17 = arith.truncf %16 : vector<16x512xf32> to vector<16x512xbf16>
    %c0_12 = arith.constant 0 : index
    %c0_13 = arith.constant 0 : index
    %18 = vector.load %arg6[%c0_12, %c0_13] : memref<512x128xbf16, #tpu.memory_space<vmem>>, vector<512x128xbf16>
    %cst_14 = arith.constant dense<0.000000e+00> : vector<16x128xf32>
    %19 = tpu.matmul %17, %18, %cst_14 {dimension_numbers = #tpu.dot_dimension_numbers<[1], [0], [0], [1], [0, 0, 1, 1], [], []>} : vector<16x512xbf16>, vector<512x128xbf16>, vector<16x128xf32> -> vector<16x128xf32>
    %c0_15 = arith.constant 0 : index
    %c0_16 = arith.constant 0 : index
    %20 = vector.load %arg7[%c0_15, %c0_16] : memref<1x128xf32, #tpu.memory_space<vmem>>, vector<1x128xf32>
    %21 = vector.broadcast %20 : vector<1x128xf32> to vector<16x128xf32>
    %22 = arith.addf %19, %21 : vector<16x128xf32>
    %c0_17 = arith.constant 0 : index
    %c0_18 = arith.constant 0 : index
    %23 = vector.load %arg8[%c0_17, %c0_18] : memref<16x128xf32, #tpu.memory_space<vmem>>, vector<16x128xf32>
    tpu.vector_store %arg8[%c0_17, %c0_18], %22 {strides = array<i32>} : memref<16x128xf32, #tpu.memory_space<vmem>>, vector<16x128xf32>,
    return
  }
  func.func @transform_0(%arg0: i32) -> (i32, i32) {
    %c0_i32 = arith.constant 0 : i32
    %c0_i32_0 = arith.constant 0 : i32
    return %arg0, %c0_i32 : i32, i32
  }
  func.func @transform_1(%arg0: i32) -> (i32, i32) {
    %c0_i32 = arith.constant 0 : i32
    %c0_i32_0 = arith.constant 0 : i32
    %c0_i32_1 = arith.constant 0 : i32
    return %c0_i32, %c0_i32_0 : i32, i32
  }
  func.func @transform_2(%arg0: i32) -> (i32, i32) {
    %c0_i32 = arith.constant 0 : i32
    %c0_i32_0 = arith.constant 0 : i32
    %c0_i32_1 = arith.constant 0 : i32
    return %c0_i32, %c0_i32_0 : i32, i32
  }
  func.func @transform_3(%arg0: i32) -> (i32, i32) {
    %c0_i32 = arith.constant 0 : i32
    %c0_i32_0 = arith.constant 0 : i32
    %c0_i32_1 = arith.constant 0 : i32
    return %c0_i32, %c0_i32_0 : i32, i32
  }
  func.func @transform_4(%arg0: i32) -> (i32, i32) {
    %c0_i32 = arith.constant 0 : i32
    %c0_i32_0 = arith.constant 0 : i32
    %c0_i32_1 = arith.constant 0 : i32
    return %c0_i32, %c0_i32_0 : i32, i32
  }
  func.func @transform_5(%arg0: i32) -> (i32, i32) {
    %c0_i32 = arith.constant 0 : i32
    %c0_i32_0 = arith.constant 0 : i32
    %c0_i32_1 = arith.constant 0 : i32
    return %c0_i32, %c0_i32_0 : i32, i32
  }
  func.func @transform_6(%arg0: i32) -> (i32, i32) {
    %c0_i32 = arith.constant 0 : i32
    %c0_i32_0 = arith.constant 0 : i32
    %c0_i32_1 = arith.constant 0 : i32
    return %c0_i32, %c0_i32_0 : i32, i32
  }
  func.func @transform_7(%arg0: i32) -> (i32, i32) {
    %c0_i32 = arith.constant 0 : i32
    %c0_i32_0 = arith.constant 0 : i32
    return %arg0, %c0_i32 : i32, i32
  }
}

</mosaic_0001>

<llo_original>
// kernel: fc_critic_forward.1
$region0: #{fc_critic_forward.1}
  #allocation0 [shape = 'u32[]', space=smem, size = 0x4, offset = 0x4, fixed_abs, tag = 'smem constant byte address 0x4 - core index']
  #allocation1 [shape = 'u32[144,128]{1,0:T(1,128)}', space=vmem, size = 0x12000, scoped, tag = 'internal scratch']
  %s0 = inlined_call_operand.vmem [shape: f32[16,1024], index: 0, kind: input, shape index: {}]
  %s1 = inlined_call_operand.hbm [shape: bf16[1024,512], index: 1, kind: input, shape index: {}]
  %s2 = inlined_call_operand.vmem [shape: f32[1,512], index: 2, kind: input, shape index: {}]
  %s3 = inlined_call_operand.hbm [shape: bf16[512,512], index: 3, kind: input, shape index: {}]
  %s4 = inlined_call_operand.vmem [shape: f32[1,512], index: 4, kind: input, shape index: {}]
  %s5 = inlined_call_operand.vmem [shape: bf16[512,128], index: 5, kind: input, shape index: {}]
  %s6 = inlined_call_operand.vmem [shape: f32[1,128], index: 6, kind: input, shape index: {}]
  %s7 = inlined_call_operand.vmem [shape: f32[16,128], index: 7, kind: output, shape index: {}]
  %s8 = sld [smem:[#allocation0]]
  $region46: #{fc_critic_forward.1} parent=0
    _
  %s10 = ssub.s32 1, %s8
  %s11 = scalar_select 0, %s10, %s8
  $region1: #{fc_critic_forward.1} parent=0
    #allocation2 [shape = 'u8[1048576]{0}', space=vmem, size = 0x100000, scoped, tag = 'input window, operand 1, single buffered']
    #allocation3 [shape = 's32[1]{0}', space=sflag, size = 0x4, scoped, tag = 'scoped memory for fc_critic_forward.1']
    #allocation4 [shape = 'u8[524288]{0}', space=vmem, size = 0x80000, scoped, tag = 'input window, operand 3, single buffered']
    #allocation5 [shape = 's32[1]{0}', space=sflag, size = 0x4, scoped, tag = 'scoped memory for fc_critic_forward.1']
    %12 = vsyncpa [#allocation3], 0
    %13 = vsyncpa [#allocation5], 0
    // Predicated region
    $region2: #{fc_critic_forward.1} parent=1 // pred_check
      _
    $region3: #{fc_critic_forward.1} parent=1 // pred_check_branch
      %15 = sbr.rel (0) target = $region5
    $region4: #{fc_critic_forward.1} parent=1 // pred_region
      _
    $region5: #{fc_critic_forward.1} parent=1 // pred_fallthru
      _
    // Predicated region
    $region6: #{fc_critic_forward.1} parent=1 // pred_check
      _
    $region7: #{fc_critic_forward.1} parent=1 // pred_check_branch
      %17 = sbr.rel (0) target = $region9
    $region8: #{fc_critic_forward.1} parent=1 // pred_region
      %s19 = ssub.s32 32768, 32768
      %20 = vsyncadd [#allocation3], %s19
      %s21 = sshll.u32 [#allocation2], 4
      %s22 = int_to_ptr.vmem [resolvable:$true] %s21
      %27 = dma.hbm_to_vmem [thread:$0]  %s1, 32768, %s22, [#allocation3], 256, 256, 16
    $region9: #{fc_critic_forward.1} parent=1 // pred_fallthru
      _
    // Predicated region
    $region10: #{fc_critic_forward.1} parent=1 // pred_check
      _
    $region11: #{fc_critic_forward.1} parent=1 // pred_check_branch
      %29 = sbr.rel (0) target = $region13
    $region12: #{fc_critic_forward.1} parent=1 // pred_region
      _
    $region13: #{fc_critic_forward.1} parent=1 // pred_fallthru
      _
    // Predicated region
    $region14: #{fc_critic_forward.1} parent=1 // pred_check
      _
    $region15: #{fc_critic_forward.1} parent=1 // pred_check_branch
      %31 = sbr.rel (0) target = $region17
    $region16: #{fc_critic_forward.1} parent=1 // pred_region
      %s33 = ssub.s32 16384, 16384
      %34 = vsyncadd [#allocation5], %s33
      %s35 = sshll.u32 [#allocation4], 4
      %s36 = int_to_ptr.vmem [resolvable:$true] %s35
      %41 = dma.hbm_to_vmem [thread:$0]  %s3, 16384, %s36, [#allocation5], 256, 256, 16
    $region17: #{fc_critic_forward.1} parent=1 // pred_fallthru
      _
    // Predicated region
    $region18: #{fc_critic_forward.1} parent=1 // pred_check
      _
    $region19: #{fc_critic_forward.1} parent=1 // pred_check_branch
      %43 = sbr.rel (0) target = $region21
    $region20: #{fc_critic_forward.1} parent=1 // pred_region
      _
    $region21: #{fc_critic_forward.1} parent=1 // pred_fallthru
      _
    // Predicated region
    $region22: #{fc_critic_forward.1} parent=1 // pred_check
      _
    $region23: #{fc_critic_forward.1} parent=1 // pred_check_branch
      %45 = sbr.rel (0) target = $region25
    $region24: #{fc_critic_forward.1} parent=1 // pred_region
      _
    $region25: #{fc_critic_forward.1} parent=1 // pred_fallthru
      _
    // Predicated region
    $region26: #{fc_critic_forward.1} parent=1 // pred_check
      _
    $region27: #{fc_critic_forward.1} parent=1 // pred_check_branch
      %47 = sbr.rel (0) target = $region29
    $region28: #{fc_critic_forward.1} parent=1 // pred_region
      _
    $region29: #{fc_critic_forward.1} parent=1 // pred_fallthru
      _
    // Predicated region
    $region30: #{fc_critic_forward.1} parent=1 // pred_check
      _
    $region31: #{fc_critic_forward.1} parent=1 // pred_check_branch
      %49 = sbr.rel (0) target = $region33
    $region32: #{fc_critic_forward.1} parent=1 // pred_region
      %50 = dma.done [#allocation3], 32768
    $region33: #{fc_critic_forward.1} parent=1 // pred_fallthru
      _
    // Predicated region
    $region34: #{fc_critic_forward.1} parent=1 // pred_check
      _
    $region35: #{fc_critic_forward.1} parent=1 // pred_check_branch
      %52 = sbr.rel (0) target = $region37
    $region36: #{fc_critic_forward.1} parent=1 // pred_region
      %53 = dma.done [#allocation5], 16384
    $region37: #{fc_critic_forward.1} parent=1 // pred_fallthru
      _
    %v55 = vld [vmem:[%s0] sm:$0xff]
    %v56 = vld [vmem:[%s0 + $0x8] sm:$0xff]
    %v57 = vld [vmem:[%s0 + $0x10] sm:$0xff]
    %v58 = vld [vmem:[%s0 + $0x18] sm:$0xff]
    %v59 = vld [vmem:[%s0 + $0x20] sm:$0xff]
    %v60 = vld [vmem:[%s0 + $0x28] sm:$0xff]
    %v61 = vld [vmem:[%s0 + $0x30] sm:$0xff]
    %v62 = vld [vmem:[%s0 + $0x38] sm:$0xff]
    %v63 = vld [vmem:[%s0 + $0x40] sm:$0xff]
    %v64 = vld [vmem:[%s0 + $0x48] sm:$0xff]
    %v65 = vld [vmem:[%s0 + $0x50] sm:$0xff]
    %v66 = vld [vmem:[%s0 + $0x58] sm:$0xff]
    %v67 = vld [vmem:[%s0 + $0x60] sm:$0xff]
    %v68 = vld [vmem:[%s0 + $0x68] sm:$0xff]
    %v69 = vld [vmem:[%s0 + $0x70] sm:$0xff]
    %v70 = vld [vmem:[%s0 + $0x78] sm:$0xff]
    %v71 = vpack.c.bf16 %v63, %v55
    %v72 = vpack.c.bf16 %v64, %v56
    %v73 = vpack.c.bf16 %v65, %v57
    %v74 = vpack.c.bf16 %v66, %v58
    %v75 = vpack.c.bf16 %v67, %v59
    %v76 = vpack.c.bf16 %v68, %v60
    %v77 = vpack.c.bf16 %v69, %v61
    %v78 = vpack.c.bf16 %v70, %v62
    %v79 = vld [vmem:[#allocation2] sm:$0xff]
    %v80 = vld [vmem:[#allocation2 + $0x8] sm:$0xff]
    %v81 = vld [vmem:[#allocation2 + $0x10] sm:$0xff]
    %v82 = vld [vmem:[#allocation2 + $0x18] sm:$0xff]
    %v83 = vld [vmem:[#allocation2 + $0x20] sm:$0xff]
    %v84 = vld [vmem:[#allocation2 + $0x28] sm:$0xff]
    %v85 = vld [vmem:[#allocation2 + $0x30] sm:$0xff]
    %v86 = vld [vmem:[#allocation2 + $0x38] sm:$0xff]
    %v87 = vld [vmem:[#allocation2 + $0x40] sm:$0xff]
    %v88 = vld [vmem:[#allocation2 + $0x48] sm:$0xff]
    %v89 = vld [vmem:[#allocation2 + $0x50] sm:$0xff]
    %v90 = vld [vmem:[#allocation2 + $0x58] sm:$0xff]
    %v91 = vld [vmem:[#allocation2 + $0x60] sm:$0xff]
    %v92 = vld [vmem:[#allocation2 + $0x68] sm:$0xff]
    %v93 = vld [vmem:[#allocation2 + $0x70] sm:$0xff]
    %v94 = vld [vmem:[#allocation2 + $0x78] sm:$0xff]
    %v95 = vld [vmem:[#allocation2 + $0x80] sm:$0xff]
    %v96 = vld [vmem:[#allocation2 + $0x88] sm:$0xff]
    %v97 = vld [vmem:[#allocation2 + $0x90] sm:$0xff]
    %v98 = vld [vmem:[#allocation2 + $0x98] sm:$0xff]
    %v99 = vld [vmem:[#allocation2 + $0xa0] sm:$0xff]
    %v100 = vld [vmem:[#allocation2 + $0xa8] sm:$0xff]
    %v101 = vld [vmem:[#allocation2 + $0xb0] sm:$0xff]
    %v102 = vld [vmem:[#allocation2 + $0xb8] sm:$0xff]
    %v103 = vld [vmem:[#allocation2 + $0xc0] sm:$0xff]
    %v104 = vld [vmem:[#allocation2 + $0xc8] sm:$0xff]
    %v105 = vld [vmem:[#allocation2 + $0xd0] sm:$0xff]
    %v106 = vld [vmem:[#allocation2 + $0xd8] sm:$0xff]
    %v107 = vld [vmem:[#allocation2 + $0xe0] sm:$0xff]
    %v108 = vld [vmem:[#allocation2 + $0xe8] sm:$0xff]
    %v109 = vld [vmem:[#allocation2 + $0xf0] sm:$0xff]
    %v110 = vld [vmem:[#allocation2 + $0xf8] sm:$0xff]
    %v111 = vld [vmem:[#allocation2 + $0x100] sm:$0xff]
    %v112 = vld [vmem:[#allocation2 + $0x108] sm:$0xff]
    %v113 = vld [vmem:[#allocation2 + $0x110] sm:$0xff]
    %v114 = vld [vmem:[#allocation2 + $0x118] sm:$0xff]
    %v115 = vld [vmem:[#allocation2 + $0x120] sm:$0xff]
    %v116 = vld [vmem:[#allocation2 + $0x128] sm:$0xff]
    %v117 = vld [vmem:[#allocation2 + $0x130] sm:$0xff]
    %v118 = vld [vmem:[#allocation2 + $0x138] sm:$0xff]
    %v119 = vld [vmem:[#allocation2 + $0x140] sm:$0xff]
    %v120 = vld [vmem:[#allocation2 + $0x148] sm:$0xff]
    %v121 = vld [vmem:[#allocation2 + $0x150] sm:$0xff]
    %v122 = vld [vmem:[#allocation2 + $0x158] sm:$0xff]
    %v123 = vld [vmem:[#allocation2 + $0x160] sm:$0xff]
    %v124 = vld [vmem:[#allocation2 + $0x168] sm:$0xff]
    %v125 = vld [vmem:[#allocation2 + $0x170] sm:$0xff]
    %v126 = vld [vmem:[#allocation2 + $0x178] sm:$0xff]
    %v127 = vld [vmem:[#allocation2 + $0x180] sm:$0xff]
    %v128 = vld [vmem:[#allocation2 + $0x188] sm:$0xff]
    %v129 = vld [vmem:[#allocation2 + $0x190] sm:$0xff]
    %v130 = vld [vmem:[#allocation2 + $0x198] sm:$0xff]
    %v131 = vld [vmem:[#allocation2 + $0x1a0] sm:$0xff]
    %v132 = vld [vmem:[#allocation2 + $0x1a8] sm:$0xff]
    %v133 = vld [vmem:[#allocation2 + $0x1b0] sm:$0xff]
    %v134 = vld [vmem:[#allocation2 + $0x1b8] sm:$0xff]
    %v135 = vld [vmem:[#allocation2 + $0x1c0] sm:$0xff]
    %v136 = vld [vmem:[#allocation2 + $0x1c8] sm:$0xff]
    %v137 = vld [vmem:[#allocation2 + $0x1d0] sm:$0xff]
    %v138 = vld [vmem:[#allocation2 + $0x1d8] sm:$0xff]
    %v139 = vld [vmem:[#allocation2 + $0x1e0] sm:$0xff]
    %v140 = vld [vmem:[#allocation2 + $0x1e8] sm:$0xff]
    %v141 = vld [vmem:[#allocation2 + $0x1f0] sm:$0xff]
    %v142 = vld [vmem:[#allocation2 + $0x1f8] sm:$0xff]
    %v143 = vld [vmem:[#allocation2 + $0x200] sm:$0xff]
    %v144 = vld [vmem:[#allocation2 + $0x208] sm:$0xff]
    %v145 = vld [vmem:[#allocation2 + $0x210] sm:$0xff]
    %v146 = vld [vmem:[#allocation2 + $0x218] sm:$0xff]
    %v147 = vld [vmem:[#allocation2 + $0x220] sm:$0xff]
    %v148 = vld [vmem:[#allocation2 + $0x228] sm:$0xff]
    %v149 = vld [vmem:[#allocation2 + $0x230] sm:$0xff]
    %v150 = vld [vmem:[#allocation2 + $0x238] sm:$0xff]
    %v151 = vld [vmem:[#allocation2 + $0x240] sm:$0xff]
    %v152 = vld [vmem:[#allocation2 + $0x248] sm:$0xff]
    %v153 = vld [vmem:[#allocation2 + $0x250] sm:$0xff]
    %v154 = vld [vmem:[#allocation2 + $0x258] sm:$0xff]
    %v155 = vld [vmem:[#allocation2 + $0x260] sm:$0xff]
    %v156 = vld [vmem:[#allocation2 + $0x268] sm:$0xff]
    %v157 = vld [vmem:[#allocation2 + $0x270] sm:$0xff]
    %v158 = vld [vmem:[#allocation2 + $0x278] sm:$0xff]
    %v159 = vld [vmem:[#allocation2 + $0x280] sm:$0xff]
    %v160 = vld [vmem:[#allocation2 + $0x288] sm:$0xff]
    %v161 = vld [vmem:[#allocation2 + $0x290] sm:$0xff]
    %v162 = vld [vmem:[#allocation2 + $0x298] sm:$0xff]
    %v163 = vld [vmem:[#allocation2 + $0x2a0] sm:$0xff]
    %v164 = vld [vmem:[#allocation2 + $0x2a8] sm:$0xff]
    %v165 = vld [vmem:[#allocation2 + $0x2b0] sm:$0xff]
    %v166 = vld [vmem:[#allocation2 + $0x2b8] sm:$0xff]
    %v167 = vld [vmem:[#allocation2 + $0x2c0] sm:$0xff]
    %v168 = vld [vmem:[#allocation2 + $0x2c8] sm:$0xff]
    %v169 = vld [vmem:[#allocation2 + $0x2d0] sm:$0xff]
    %v170 = vld [vmem:[#allocation2 + $0x2d8] sm:$0xff]
    %v171 = vld [vmem:[#allocation2 + $0x2e0] sm:$0xff]
    %v172 = vld [vmem:[#allocation2 + $0x2e8] sm:$0xff]
    %v173 = vld [vmem:[#allocation2 + $0x2f0] sm:$0xff]
    %v174 = vld [vmem:[#allocation2 + $0x2f8] sm:$0xff]
    %v175 = vld [vmem:[#allocation2 + $0x300] sm:$0xff]
    %v176 = vld [vmem:[#allocation2 + $0x308] sm:$0xff]
    %v177 = vld [vmem:[#allocation2 + $0x310] sm:$0xff]
    %v178 = vld [vmem:[#allocation2 + $0x318] sm:$0xff]
    %v179 = vld [vmem:[#allocation2 + $0x320] sm:$0xff]
    %v180 = vld [vmem:[#allocation2 + $0x328] sm:$0xff]
    %v181 = vld [vmem:[#allocation2 + $0x330] sm:$0xff]
    %v182 = vld [vmem:[#allocation2 + $0x338] sm:$0xff]
    %v183 = vld [vmem:[#allocation2 + $0x340] sm:$0xff]
    %v184 = vld [vmem:[#allocation2 + $0x348] sm:$0xff]
    %v185 = vld [vmem:[#allocation2 + $0x350] sm:$0xff]
    %v186 = vld [vmem:[#allocation2 + $0x358] sm:$0xff]
    %v187 = vld [vmem:[#allocation2 + $0x360] sm:$0xff]
    %v188 = vld [vmem:[#allocation2 + $0x368] sm:$0xff]
    %v189 = vld [vmem:[#allocation2 + $0x370] sm:$0xff]
    %v190 = vld [vmem:[#allocation2 + $0x378] sm:$0xff]
    %v191 = vld [vmem:[#allocation2 + $0x380] sm:$0xff]
    %v192 = vld [vmem:[#allocation2 + $0x388] sm:$0xff]
    %v193 = vld [vmem:[#allocation2 + $0x390] sm:$0xff]
    %v194 = vld [vmem:[#allocation2 + $0x398] sm:$0xff]
    %v195 = vld [vmem:[#allocation2 + $0x3a0] sm:$0xff]
    %v196 = vld [vmem:[#allocation2 + $0x3a8] sm:$0xff]
    %v197 = vld [vmem:[#allocation2 + $0x3b0] sm:$0xff]
    %v198 = vld [vmem:[#allocation2 + $0x3b8] sm:$0xff]
    %v199 = vld [vmem:[#allocation2 + $0x3c0] sm:$0xff]
    %v200 = vld [vmem:[#allocation2 + $0x3c8] sm:$0xff]
    %v201 = vld [vmem:[#allocation2 + $0x3d0] sm:$0xff]
    %v202 = vld [vmem:[#allocation2 + $0x3d8] sm:$0xff]
    %v203 = vld [vmem:[#allocation2 + $0x3e0] sm:$0xff]
    %v204 = vld [vmem:[#allocation2 + $0x3e8] sm:$0xff]
    %v205 = vld [vmem:[#allocation2 + $0x3f0] sm:$0xff]
    %v206 = vld [vmem:[#allocation2 + $0x3f8] sm:$0xff]
    %v207 = vld [vmem:[#allocation2 + $0x400] sm:$0xff]
    %v208 = vld [vmem:[#allocation2 + $0x408] sm:$0xff]
    %v209 = vld [vmem:[#allocation2 + $0x410] sm:$0xff]
    %v210 = vld [vmem:[#allocation2 + $0x418] sm:$0xff]
    %v211 = vld [vmem:[#allocation2 + $0x420] sm:$0xff]
    %v212 = vld [vmem:[#allocation2 + $0x428] sm:$0xff]
    %v213 = vld [vmem:[#allocation2 + $0x430] sm:$0xff]
    %v214 = vld [vmem:[#allocation2 + $0x438] sm:$0xff]
    %v215 = vld [vmem:[#allocation2 + $0x440] sm:$0xff]
    %v216 = vld [vmem:[#allocation2 + $0x448] sm:$0xff]
    %v217 = vld [vmem:[#allocation2 + $0x450] sm:$0xff]
    %v218 = vld [vmem:[#allocation2 + $0x458] sm:$0xff]
    %v219 = vld [vmem:[#allocation2 + $0x460] sm:$0xff]
    %v220 = vld [vmem:[#allocation2 + $0x468] sm:$0xff]
    %v221 = vld [vmem:[#allocation2 + $0x470] sm:$0xff]
    %v222 = vld [vmem:[#allocation2 + $0x478] sm:$0xff]
    %v223 = vld [vmem:[#allocation2 + $0x480] sm:$0xff]
    %v224 = vld [vmem:[#allocation2 + $0x488] sm:$0xff]
    %v225 = vld [vmem:[#allocation2 + $0x490] sm:$0xff]
    %v226 = vld [vmem:[#allocation2 + $0x498] sm:$0xff]
    %v227 = vld [vmem:[#allocation2 + $0x4a0] sm:$0xff]
    %v228 = vld [vmem:[#allocation2 + $0x4a8] sm:$0xff]
    %v229 = vld [vmem:[#allocation2 + $0x4b0] sm:$0xff]
    %v230 = vld [vmem:[#allocation2 + $0x4b8] sm:$0xff]
    %v231 = vld [vmem:[#allocation2 + $0x4c0] sm:$0xff]
    %v232 = vld [vmem:[#allocation2 + $0x4c8] sm:$0xff]
    %v233 = vld [vmem:[#allocation2 + $0x4d0] sm:$0xff]
    %v234 = vld [vmem:[#allocation2 + $0x4d8] sm:$0xff]
    %v235 = vld [vmem:[#allocation2 + $0x4e0] sm:$0xff]
    %v236 = vld [vmem:[#allocation2 + $0x4e8] sm:$0xff]
    %v237 = vld [vmem:[#allocation2 + $0x4f0] sm:$0xff]
    %v238 = vld [vmem:[#allocation2 + $0x4f8] sm:$0xff]
    %v239 = vld [vmem:[#allocation2 + $0x500] sm:$0xff]
    %v240 = vld [vmem:[#allocation2 + $0x508] sm:$0xff]
    %v241 = vld [vmem:[#allocation2 + $0x510] sm:$0xff]
    %v242 = vld [vmem:[#allocation2 + $0x518] sm:$0xff]
    %v243 = vld [vmem:[#allocation2 + $0x520] sm:$0xff]
    %v244 = vld [vmem:[#allocation2 + $0x528] sm:$0xff]
    %v245 = vld [vmem:[#allocation2 + $0x530] sm:$0xff]
    %v246 = vld [vmem:[#allocation2 + $0x538] sm:$0xff]
    %v247 = vld [vmem:[#allocation2 + $0x540] sm:$0xff]
    %v248 = vld [vmem:[#allocation2 + $0x548] sm:$0xff]
    %v249 = vld [vmem:[#allocation2 + $0x550] sm:$0xff]
    %v250 = vld [vmem:[#allocation2 + $0x558] sm:$0xff]
    %v251 = vld [vmem:[#allocation2 + $0x560] sm:$0xff]
    %v252 = vld [vmem:[#allocation2 + $0x568] sm:$0xff]
    %v253 = vld [vmem:[#allocation2 + $0x570] sm:$0xff]
    %v254 = vld [vmem:[#allocation2 + $0x578] sm:$0xff]
    %v255 = vld [vmem:[#allocation2 + $0x580] sm:$0xff]
    %v256 = vld [vmem:[#allocation2 + $0x588] sm:$0xff]
    %v257 = vld [vmem:[#allocation2 + $0x590] sm:$0xff]
    %v258 = vld [vmem:[#allocation2 + $0x598] sm:$0xff]
    %v259 = vld [vmem:[#allocation2 + $0x5a0] sm:$0xff]
    %v260 = vld [vmem:[#allocation2 + $0x5a8] sm:$0xff]
    %v261 = vld [vmem:[#allocation2 + $0x5b0] sm:$0xff]
    %v262 = vld [vmem:[#allocation2 + $0x5b8] sm:$0xff]
    %v263 = vld [vmem:[#allocation2 + $0x5c0] sm:$0xff]
    %v264 = vld [vmem:[#allocation2 + $0x5c8] sm:$0xff]
    %v265 = vld [vmem:[#allocation2 + $0x5d0] sm:$0xff]
    %v266 = vld [vmem:[#allocation2 + $0x5d8] sm:$0xff]
    %v267 = vld [vmem:[#allocation2 + $0x5e0] sm:$0xff]
    %v268 = vld [vmem:[#allocation2 + $0x5e8] sm:$0xff]
    %v269 = vld [vmem:[#allocation2 + $0x5f0] sm:$0xff]
    %v270 = vld [vmem:[#allocation2 + $0x5f8] sm:$0xff]
    %v271 = vld [vmem:[#allocation2 + $0x600] sm:$0xff]
    %v272 = vld [vmem:[#allocation2 + $0x608] sm:$0xff]
    %v273 = vld [vmem:[#allocation2 + $0x610] sm:$0xff]
    %v274 = vld [vmem:[#allocation2 + $0x618] sm:$0xff]
    %v275 = vld [vmem:[#allocation2 + $0x620] sm:$0xff]
    %v276 = vld [vmem:[#allocation2 + $0x628] sm:$0xff]
    %v277 = vld [vmem:[#allocation2 + $0x630] sm:$0xff]
    %v278 = vld [vmem:[#allocation2 + $0x638] sm:$0xff]
    %v279 = vld [vmem:[#allocation2 + $0x640] sm:$0xff]
    %v280 = vld [vmem:[#allocation2 + $0x648] sm:$0xff]
    %v281 = vld [vmem:[#allocation2 + $0x650] sm:$0xff]
    %v282 = vld [vmem:[#allocation2 + $0x658] sm:$0xff]
    %v283 = vld [vmem:[#allocation2 + $0x660] sm:$0xff]
    %v284 = vld [vmem:[#allocation2 + $0x668] sm:$0xff]
    %v285 = vld [vmem:[#allocation2 + $0x670] sm:$0xff]
    %v286 = vld [vmem:[#allocation2 + $0x678] sm:$0xff]
    %v287 = vld [vmem:[#allocation2 + $0x680] sm:$0xff]
    %v288 = vld [vmem:[#allocation2 + $0x688] sm:$0xff]
    %v289 = vld [vmem:[#allocation2 + $0x690] sm:$0xff]
    %v290 = vld [vmem:[#allocation2 + $0x698] sm:$0xff]
    %v291 = vld [vmem:[#allocation2 + $0x6a0] sm:$0xff]
    %v292 = vld [vmem:[#allocation2 + $0x6a8] sm:$0xff]
    %v293 = vld [vmem:[#allocation2 + $0x6b0] sm:$0xff]
    %v294 = vld [vmem:[#allocation2 + $0x6b8] sm:$0xff]
    %v295 = vld [vmem:[#allocation2 + $0x6c0] sm:$0xff]
    %v296 = vld [vmem:[#allocation2 + $0x6c8] sm:$0xff]
    %v297 = vld [vmem:[#allocation2 + $0x6d0] sm:$0xff]
    %v298 = vld [vmem:[#allocation2 + $0x6d8] sm:$0xff]
    %v299 = vld [vmem:[#allocation2 + $0x6e0] sm:$0xff]
    %v300 = vld [vmem:[#allocation2 + $0x6e8] sm:$0xff]
    %v301 = vld [vmem:[#allocation2 + $0x6f0] sm:$0xff]
    %v302 = vld [vmem:[#allocation2 + $0x6f8] sm:$0xff]
    %v303 = vld [vmem:[#allocation2 + $0x700] sm:$0xff]
    %v304 = vld [vmem:[#allocation2 + $0x708] sm:$0xff]
    %v305 = vld [vmem:[#allocation2 + $0x710] sm:$0xff]
    %v306 = vld [vmem:[#allocation2 + $0x718] sm:$0xff]
    %v307 = vld [vmem:[#allocation2 + $0x720] sm:$0xff]
    %v308 = vld [vmem:[#allocation2 + $0x728] sm:$0xff]
    %v309 = vld [vmem:[#allocation2 + $0x730] sm:$0xff]
    %v310 = vld [vmem:[#allocation2 + $0x738] sm:$0xff]
    %v311 = vld [vmem:[#allocation2 + $0x740] sm:$0xff]
    %v312 = vld [vmem:[#allocation2 + $0x748] sm:$0xff]
    %v313 = vld [vmem:[#allocation2 + $0x750] sm:$0xff]
    %v314 = vld [vmem:[#allocation2 + $0x758] sm:$0xff]
    %v315 = vld [vmem:[#allocation2 + $0x760] sm:$0xff]
    %v316 = vld [vmem:[#allocation2 + $0x768] sm:$0xff]
    %v317 = vld [vmem:[#allocation2 + $0x770] sm:$0xff]
    %v318 = vld [vmem:[#allocation2 + $0x778] sm:$0xff]
    %v319 = vld [vmem:[#allocation2 + $0x780] sm:$0xff]
    %v320 = vld [vmem:[#allocation2 + $0x788] sm:$0xff]
    %v321 = vld [vmem:[#allocation2 + $0x790] sm:$0xff]
    %v322 = vld [vmem:[#allocation2 + $0x798] sm:$0xff]
    %v323 = vld [vmem:[#allocation2 + $0x7a0] sm:$0xff]
    %v324 = vld [vmem:[#allocation2 + $0x7a8] sm:$0xff]
    %v325 = vld [vmem:[#allocation2 + $0x7b0] sm:$0xff]
    %v326 = vld [vmem:[#allocation2 + $0x7b8] sm:$0xff]
    %v327 = vld [vmem:[#allocation2 + $0x7c0] sm:$0xff]
    %v328 = vld [vmem:[#allocation2 + $0x7c8] sm:$0xff]
    %v329 = vld [vmem:[#allocation2 + $0x7d0] sm:$0xff]
    %v330 = vld [vmem:[#allocation2 + $0x7d8] sm:$0xff]
    %v331 = vld [vmem:[#allocation2 + $0x7e0] sm:$0xff]
    %v332 = vld [vmem:[#allocation2 + $0x7e8] sm:$0xff]
    %v333 = vld [vmem:[#allocation2 + $0x7f0] sm:$0xff]
    %v334 = vld [vmem:[#allocation2 + $0x7f8] sm:$0xff]
    %v335 = vld [vmem:[%s2] sm:$0xf]
    %v337 = vlaneseq
    %v338 = vshrl.u32 %v337, 7
    %v339 = vsub.s32 0, %v338
    %v340 = vrot.slane %v335, %v339
    %v341 = vlaneseq
    %v342 = vshrl.u32 %v341, 7
    %v343 = vsub.s32 1, %v342
    %v344 = vrot.slane %v335, %v343
    %v345 = vlaneseq
    %v346 = vshrl.u32 %v345, 7
    %v347 = vsub.s32 2, %v346
    %v348 = vrot.slane %v335, %v347
    %v349 = vlaneseq
    %v350 = vshrl.u32 %v349, 7
    %v351 = vsub.s32 3, %v350
    %v352 = vrot.slane %v335, %v351
    %v613 = vunpack.c.l.b16 %v79
    %v614 = vunpack.c.h.b16 %v79
    %v615 = vunpack.c.l.b16 %v80
    %v616 = vunpack.c.h.b16 %v80
    %v617 = vunpack.c.l.b16 %v81
    %v618 = vunpack.c.h.b16 %v81
    %v619 = vunpack.c.l.b16 %v82
    %v620 = vunpack.c.h.b16 %v82
    %v621 = vunpack.c.l.b16 %v83
    %v622 = vunpack.c.h.b16 %v83
    %v623 = vunpack.c.l.b16 %v84
    %v624 = vunpack.c.h.b16 %v84
    %v625 = vunpack.c.l.b16 %v85
    %v626 = vunpack.c.h.b16 %v85
    %v627 = vunpack.c.l.b16 %v86
    %v628 = vunpack.c.h.b16 %v86
    %v629 = vunpack.c.l.b16 %v87
    %v630 = vunpack.c.h.b16 %v87
    %v631 = vunpack.c.l.b16 %v88
    %v632 = vunpack.c.h.b16 %v88
    %v633 = vunpack.c.l.b16 %v89
    %v634 = vunpack.c.h.b16 %v89
    %v635 = vunpack.c.l.b16 %v90
    %v636 = vunpack.c.h.b16 %v90
    %v637 = vunpack.c.l.b16 %v91
    %v638 = vunpack.c.h.b16 %v91
    %v639 = vunpack.c.l.b16 %v92
    %v640 = vunpack.c.h.b16 %v92
    %v641 = vunpack.c.l.b16 %v93
    %v642 = vunpack.c.h.b16 %v93
    %v643 = vunpack.c.l.b16 %v94
    %v644 = vunpack.c.h.b16 %v94
    %v645 = vunpack.c.l.b16 %v95
    %v646 = vunpack.c.h.b16 %v95
    %v647 = vunpack.c.l.b16 %v96
    %v648 = vunpack.c.h.b16 %v96
    %v649 = vunpack.c.l.b16 %v97
    %v650 = vunpack.c.h.b16 %v97
    %v651 = vunpack.c.l.b16 %v98
    %v652 = vunpack.c.h.b16 %v98
    %v653 = vunpack.c.l.b16 %v99
    %v654 = vunpack.c.h.b16 %v99
    %v655 = vunpack.c.l.b16 %v100
    %v656 = vunpack.c.h.b16 %v100
    %v657 = vunpack.c.l.b16 %v101
    %v658 = vunpack.c.h.b16 %v101
    %v659 = vunpack.c.l.b16 %v102
    %v660 = vunpack.c.h.b16 %v102
    %v661 = vunpack.c.l.b16 %v103
    %v662 = vunpack.c.h.b16 %v103
    %v663 = vunpack.c.l.b16 %v104
    %v664 = vunpack.c.h.b16 %v104
    %v665 = vunpack.c.l.b16 %v105
    %v666 = vunpack.c.h.b16 %v105
    %v667 = vunpack.c.l.b16 %v106
    %v668 = vunpack.c.h.b16 %v106
    %v669 = vunpack.c.l.b16 %v107
    %v670 = vunpack.c.h.b16 %v107
    %v671 = vunpack.c.l.b16 %v108
    %v672 = vunpack.c.h.b16 %v108
    %v673 = vunpack.c.l.b16 %v109
    %v674 = vunpack.c.h.b16 %v109
    %v675 = vunpack.c.l.b16 %v110
    %v676 = vunpack.c.h.b16 %v110
    %v677 = vunpack.c.l.b16 %v111
    %v678 = vunpack.c.h.b16 %v111
    %v679 = vunpack.c.l.b16 %v112
    %v680 = vunpack.c.h.b16 %v112
    %v681 = vunpack.c.l.b16 %v113
    %v682 = vunpack.c.h.b16 %v113
    %v683 = vunpack.c.l.b16 %v114
    %v684 = vunpack.c.h.b16 %v114
    %v685 = vunpack.c.l.b16 %v115
    %v686 = vunpack.c.h.b16 %v115
    %v687 = vunpack.c.l.b16 %v116
    %v688 = vunpack.c.h.b16 %v116
    %v689 = vunpack.c.l.b16 %v117
    %v690 = vunpack.c.h.b16 %v117
    %v691 = vunpack.c.l.b16 %v118
    %v692 = vunpack.c.h.b16 %v118
    %v693 = vunpack.c.l.b16 %v119
    %v694 = vunpack.c.h.b16 %v119
    %v695 = vunpack.c.l.b16 %v120
    %v696 = vunpack.c.h.b16 %v120
    %v697 = vunpack.c.l.b16 %v121
    %v698 = vunpack.c.h.b16 %v121
    %v699 = vunpack.c.l.b16 %v122
    %v700 = vunpack.c.h.b16 %v122
    %v701 = vunpack.c.l.b16 %v123
    %v702 = vunpack.c.h.b16 %v123
    %v703 = vunpack.c.l.b16 %v124
    %v704 = vunpack.c.h.b16 %v124
    %v705 = vunpack.c.l.b16 %v125
    %v706 = vunpack.c.h.b16 %v125
    %v707 = vunpack.c.l.b16 %v126
    %v708 = vunpack.c.h.b16 %v126
    %v709 = vunpack.c.l.b16 %v127
    %v710 = vunpack.c.h.b16 %v127
    %v711 = vunpack.c.l.b16 %v128
    %v712 = vunpack.c.h.b16 %v128
    %v713 = vunpack.c.l.b16 %v129
    %v714 = vunpack.c.h.b16 %v129
    %v715 = vunpack.c.l.b16 %v130
    %v716 = vunpack.c.h.b16 %v130
    %v717 = vunpack.c.l.b16 %v131
    %v718 = vunpack.c.h.b16 %v131
    %v719 = vunpack.c.l.b16 %v132
    %v720 = vunpack.c.h.b16 %v132
    %v721 = vunpack.c.l.b16 %v133
    %v722 = vunpack.c.h.b16 %v133
    %v723 = vunpack.c.l.b16 %v134
    %v724 = vunpack.c.h.b16 %v134
    %v725 = vunpack.c.l.b16 %v135
    %v726 = vunpack.c.h.b16 %v135
    %v727 = vunpack.c.l.b16 %v136
    %v728 = vunpack.c.h.b16 %v136
    %v729 = vunpack.c.l.b16 %v137
    %v730 = vunpack.c.h.b16 %v137
    %v731 = vunpack.c.l.b16 %v138
    %v732 = vunpack.c.h.b16 %v138
    %v733 = vunpack.c.l.b16 %v139
    %v734 = vunpack.c.h.b16 %v139
    %v735 = vunpack.c.l.b16 %v140
    %v736 = vunpack.c.h.b16 %v140
    %v737 = vunpack.c.l.b16 %v141
    %v738 = vunpack.c.h.b16 %v141
    %v739 = vunpack.c.l.b16 %v142
    %v740 = vunpack.c.h.b16 %v142
    %v741 = vunpack.c.l.b16 %v143
    %v742 = vunpack.c.h.b16 %v143
    %v743 = vunpack.c.l.b16 %v144
    %v744 = vunpack.c.h.b16 %v144
    %v745 = vunpack.c.l.b16 %v145
    %v746 = vunpack.c.h.b16 %v145
    %v747 = vunpack.c.l.b16 %v146
    %v748 = vunpack.c.h.b16 %v146
    %v749 = vunpack.c.l.b16 %v147
    %v750 = vunpack.c.h.b16 %v147
    %v751 = vunpack.c.l.b16 %v148
    %v752 = vunpack.c.h.b16 %v148
    %v753 = vunpack.c.l.b16 %v149
    %v754 = vunpack.c.h.b16 %v149
    %v755 = vunpack.c.l.b16 %v150
    %v756 = vunpack.c.h.b16 %v150
    %v757 = vunpack.c.l.b16 %v151
    %v758 = vunpack.c.h.b16 %v151
    %v759 = vunpack.c.l.b16 %v152
    %v760 = vunpack.c.h.b16 %v152
    %v761 = vunpack.c.l.b16 %v153
    %v762 = vunpack.c.h.b16 %v153
    %v763 = vunpack.c.l.b16 %v154
    %v764 = vunpack.c.h.b16 %v154
    %v765 = vunpack.c.l.b16 %v155
    %v766 = vunpack.c.h.b16 %v155
    %v767 = vunpack.c.l.b16 %v156
    %v768 = vunpack.c.h.b16 %v156
    %v769 = vunpack.c.l.b16 %v157
    %v770 = vunpack.c.h.b16 %v157
    %v771 = vunpack.c.l.b16 %v158
    %v772 = vunpack.c.h.b16 %v158
    %v773 = vunpack.c.l.b16 %v159
    %v774 = vunpack.c.h.b16 %v159
    %v775 = vunpack.c.l.b16 %v160
    %v776 = vunpack.c.h.b16 %v160
    %v777 = vunpack.c.l.b16 %v161
    %v778 = vunpack.c.h.b16 %v161
    %v779 = vunpack.c.l.b16 %v162
    %v780 = vunpack.c.h.b16 %v162
    %v781 = vunpack.c.l.b16 %v163
    %v782 = vunpack.c.h.b16 %v163
    %v783 = vunpack.c.l.b16 %v164
    %v784 = vunpack.c.h.b16 %v164
    %v785 = vunpack.c.l.b16 %v165
    %v786 = vunpack.c.h.b16 %v165
    %v787 = vunpack.c.l.b16 %v166
    %v788 = vunpack.c.h.b16 %v166
    %v789 = vunpack.c.l.b16 %v167
    %v790 = vunpack.c.h.b16 %v167
    %v791 = vunpack.c.l.b16 %v168
    %v792 = vunpack.c.h.b16 %v168
    %v793 = vunpack.c.l.b16 %v169
    %v794 = vunpack.c.h.b16 %v169
    %v795 = vunpack.c.l.b16 %v170
    %v796 = vunpack.c.h.b16 %v170
    %v797 = vunpack.c.l.b16 %v171
    %v798 = vunpack.c.h.b16 %v171
    %v799 = vunpack.c.l.b16 %v172
    %v800 = vunpack.c.h.b16 %v172
    %v801 = vunpack.c.l.b16 %v173
    %v802 = vunpack.c.h.b16 %v173
    %v803 = vunpack.c.l.b16 %v174
    %v804 = vunpack.c.h.b16 %v174
    %v805 = vunpack.c.l.b16 %v175
    %v806 = vunpack.c.h.b16 %v175
    %v807 = vunpack.c.l.b16 %v176
    %v808 = vunpack.c.h.b16 %v176
    %v809 = vunpack.c.l.b16 %v177
    %v810 = vunpack.c.h.b16 %v177
    %v811 = vunpack.c.l.b16 %v178
    %v812 = vunpack.c.h.b16 %v178
    %v813 = vunpack.c.l.b16 %v179
    %v814 = vunpack.c.h.b16 %v179
    %v815 = vunpack.c.l.b16 %v180
    %v816 = vunpack.c.h.b16 %v180
    %v817 = vunpack.c.l.b16 %v181
    %v818 = vunpack.c.h.b16 %v181
    %v819 = vunpack.c.l.b16 %v182
    %v820 = vunpack.c.h.b16 %v182
    %v821 = vunpack.c.l.b16 %v183
    %v822 = vunpack.c.h.b16 %v183
    %v823 = vunpack.c.l.b16 %v184
    %v824 = vunpack.c.h.b16 %v184
    %v825 = vunpack.c.l.b16 %v185
    %v826 = vunpack.c.h.b16 %v185
    %v827 = vunpack.c.l.b16 %v186
    %v828 = vunpack.c.h.b16 %v186
    %v829 = vunpack.c.l.b16 %v187
    %v830 = vunpack.c.h.b16 %v187
    %v831 = vunpack.c.l.b16 %v188
    %v832 = vunpack.c.h.b16 %v188
    %v833 = vunpack.c.l.b16 %v189
    %v834 = vunpack.c.h.b16 %v189
    %v835 = vunpack.c.l.b16 %v190
    %v836 = vunpack.c.h.b16 %v190
    %v837 = vunpack.c.l.b16 %v191
    %v838 = vunpack.c.h.b16 %v191
    %v839 = vunpack.c.l.b16 %v192
    %v840 = vunpack.c.h.b16 %v192
    %v841 = vunpack.c.l.b16 %v193
    %v842 = vunpack.c.h.b16 %v193
    %v843 = vunpack.c.l.b16 %v194
    %v844 = vunpack.c.h.b16 %v194
    %v845 = vunpack.c.l.b16 %v195
    %v846 = vunpack.c.h.b16 %v195
    %v847 = vunpack.c.l.b16 %v196
    %v848 = vunpack.c.h.b16 %v196
    %v849 = vunpack.c.l.b16 %v197
    %v850 = vunpack.c.h.b16 %v197
    %v851 = vunpack.c.l.b16 %v198
    %v852 = vunpack.c.h.b16 %v198
    %v853 = vunpack.c.l.b16 %v199
    %v854 = vunpack.c.h.b16 %v199
    %v855 = vunpack.c.l.b16 %v200
    %v856 = vunpack.c.h.b16 %v200
    %v857 = vunpack.c.l.b16 %v201
    %v858 = vunpack.c.h.b16 %v201
    %v859 = vunpack.c.l.b16 %v202
    %v860 = vunpack.c.h.b16 %v202
    %v861 = vunpack.c.l.b16 %v203
    %v862 = vunpack.c.h.b16 %v203
    %v863 = vunpack.c.l.b16 %v204
    %v864 = vunpack.c.h.b16 %v204
    %v865 = vunpack.c.l.b16 %v205
    %v866 = vunpack.c.h.b16 %v205
    %v867 = vunpack.c.l.b16 %v206
    %v868 = vunpack.c.h.b16 %v206
    %v869 = vunpack.c.l.b16 %v207
    %v870 = vunpack.c.h.b16 %v207
    %v871 = vunpack.c.l.b16 %v208
    %v872 = vunpack.c.h.b16 %v208
    %v873 = vunpack.c.l.b16 %v209
    %v874 = vunpack.c.h.b16 %v209
    %v875 = vunpack.c.l.b16 %v210
    %v876 = vunpack.c.h.b16 %v210
    %v877 = vunpack.c.l.b16 %v211
    %v878 = vunpack.c.h.b16 %v211
    %v879 = vunpack.c.l.b16 %v212
    %v880 = vunpack.c.h.b16 %v212
    %v881 = vunpack.c.l.b16 %v213
    %v882 = vunpack.c.h.b16 %v213
    %v883 = vunpack.c.l.b16 %v214
    %v884 = vunpack.c.h.b16 %v214
    %v885 = vunpack.c.l.b16 %v215
    %v886 = vunpack.c.h.b16 %v215
    %v887 = vunpack.c.l.b16 %v216
    %v888 = vunpack.c.h.b16 %v216
    %v889 = vunpack.c.l.b16 %v217
    %v890 = vunpack.c.h.b16 %v217
    %v891 = vunpack.c.l.b16 %v218
    %v892 = vunpack.c.h.b16 %v218
    %v893 = vunpack.c.l.b16 %v219
    %v894 = vunpack.c.h.b16 %v219
    %v895 = vunpack.c.l.b16 %v220
    %v896 = vunpack.c.h.b16 %v220
    %v897 = vunpack.c.l.b16 %v221
    %v898 = vunpack.c.h.b16 %v221
    %v899 = vunpack.c.l.b16 %v222
    %v900 = vunpack.c.h.b16 %v222
    %v901 = vunpack.c.l.b16 %v223
    %v902 = vunpack.c.h.b16 %v223
    %v903 = vunpack.c.l.b16 %v224
    %v904 = vunpack.c.h.b16 %v224
    %v905 = vunpack.c.l.b16 %v225
    %v906 = vunpack.c.h.b16 %v225
    %v907 = vunpack.c.l.b16 %v226
    %v908 = vunpack.c.h.b16 %v226
    %v909 = vunpack.c.l.b16 %v227
    %v910 = vunpack.c.h.b16 %v227
    %v911 = vunpack.c.l.b16 %v228
    %v912 = vunpack.c.h.b16 %v228
    %v913 = vunpack.c.l.b16 %v229
    %v914 = vunpack.c.h.b16 %v229
    %v915 = vunpack.c.l.b16 %v230
    %v916 = vunpack.c.h.b16 %v230
    %v917 = vunpack.c.l.b16 %v231
    %v918 = vunpack.c.h.b16 %v231
    %v919 = vunpack.c.l.b16 %v232
    %v920 = vunpack.c.h.b16 %v232
    %v921 = vunpack.c.l.b16 %v233
    %v922 = vunpack.c.h.b16 %v233
    %v923 = vunpack.c.l.b16 %v234
    %v924 = vunpack.c.h.b16 %v234
    %v925 = vunpack.c.l.b16 %v235
    %v926 = vunpack.c.h.b16 %v235
    %v927 = vunpack.c.l.b16 %v236
    %v928 = vunpack.c.h.b16 %v236
    %v929 = vunpack.c.l.b16 %v237
    %v930 = vunpack.c.h.b16 %v237
    %v931 = vunpack.c.l.b16 %v238
    %v932 = vunpack.c.h.b16 %v238
    %v933 = vunpack.c.l.b16 %v239
    %v934 = vunpack.c.h.b16 %v239
    %v935 = vunpack.c.l.b16 %v240
    %v936 = vunpack.c.h.b16 %v240
    %v937 = vunpack.c.l.b16 %v241
    %v938 = vunpack.c.h.b16 %v241
    %v939 = vunpack.c.l.b16 %v242
    %v940 = vunpack.c.h.b16 %v242
    %v941 = vunpack.c.l.b16 %v243
    %v942 = vunpack.c.h.b16 %v243
    %v943 = vunpack.c.l.b16 %v244
    %v944 = vunpack.c.h.b16 %v244
    %v945 = vunpack.c.l.b16 %v245
    %v946 = vunpack.c.h.b16 %v245
    %v947 = vunpack.c.l.b16 %v246
    %v948 = vunpack.c.h.b16 %v246
    %v949 = vunpack.c.l.b16 %v247
    %v950 = vunpack.c.h.b16 %v247
    %v951 = vunpack.c.l.b16 %v248
    %v952 = vunpack.c.h.b16 %v248
    %v953 = vunpack.c.l.b16 %v249
    %v954 = vunpack.c.h.b16 %v249
    %v955 = vunpack.c.l.b16 %v250
    %v956 = vunpack.c.h.b16 %v250
    %v957 = vunpack.c.l.b16 %v251
    %v958 = vunpack.c.h.b16 %v251
    %v959 = vunpack.c.l.b16 %v252
    %v960 = vunpack.c.h.b16 %v252
    %v961 = vunpack.c.l.b16 %v253
    %v962 = vunpack.c.h.b16 %v253
    %v963 = vunpack.c.l.b16 %v254
    %v964 = vunpack.c.h.b16 %v254
    %v965 = vunpack.c.l.b16 %v255
    %v966 = vunpack.c.h.b16 %v255
    %v967 = vunpack.c.l.b16 %v256
    %v968 = vunpack.c.h.b16 %v256
    %v969 = vunpack.c.l.b16 %v257
    %v970 = vunpack.c.h.b16 %v257
    %v971 = vunpack.c.l.b16 %v258
    %v972 = vunpack.c.h.b16 %v258
    %v973 = vunpack.c.l.b16 %v259
    %v974 = vunpack.c.h.b16 %v259
    %v975 = vunpack.c.l.b16 %v260
    %v976 = vunpack.c.h.b16 %v260
    %v977 = vunpack.c.l.b16 %v261
    %v978 = vunpack.c.h.b16 %v261
    %v979 = vunpack.c.l.b16 %v262
    %v980 = vunpack.c.h.b16 %v262
    %v981 = vunpack.c.l.b16 %v263
    %v982 = vunpack.c.h.b16 %v263
    %v983 = vunpack.c.l.b16 %v264
    %v984 = vunpack.c.h.b16 %v264
    %v985 = vunpack.c.l.b16 %v265
    %v986 = vunpack.c.h.b16 %v265
    %v987 = vunpack.c.l.b16 %v266
    %v988 = vunpack.c.h.b16 %v266
    %v989 = vunpack.c.l.b16 %v267
    %v990 = vunpack.c.h.b16 %v267
    %v991 = vunpack.c.l.b16 %v268
    %v992 = vunpack.c.h.b16 %v268
    %v993 = vunpack.c.l.b16 %v269
    %v994 = vunpack.c.h.b16 %v269
    %v995 = vunpack.c.l.b16 %v270
    %v996 = vunpack.c.h.b16 %v270
    %v997 = vunpack.c.l.b16 %v271
    %v998 = vunpack.c.h.b16 %v271
    %v999 = vunpack.c.l.b16 %v272
    %v1000 = vunpack.c.h.b16 %v272
    %v1001 = vunpack.c.l.b16 %v273
    %v1002 = vunpack.c.h.b16 %v273
    %v1003 = vunpack.c.l.b16 %v274
    %v1004 = vunpack.c.h.b16 %v274
    %v1005 = vunpack.c.l.b16 %v275
    %v1006 = vunpack.c.h.b16 %v275
    %v1007 = vunpack.c.l.b16 %v276
    %v1008 = vunpack.c.h.b16 %v276
    %v1009 = vunpack.c.l.b16 %v277
    %v1010 = vunpack.c.h.b16 %v277
    %v1011 = vunpack.c.l.b16 %v278
    %v1012 = vunpack.c.h.b16 %v278
    %v1013 = vunpack.c.l.b16 %v279
    %v1014 = vunpack.c.h.b16 %v279
    %v1015 = vunpack.c.l.b16 %v280
    %v1016 = vunpack.c.h.b16 %v280
    %v1017 = vunpack.c.l.b16 %v281
    %v1018 = vunpack.c.h.b16 %v281
    %v1019 = vunpack.c.l.b16 %v282
    %v1020 = vunpack.c.h.b16 %v282
    %v1021 = vunpack.c.l.b16 %v283
    %v1022 = vunpack.c.h.b16 %v283
    %v1023 = vunpack.c.l.b16 %v284
    %v1024 = vunpack.c.h.b16 %v284
    %v1025 = vunpack.c.l.b16 %v285
    %v1026 = vunpack.c.h.b16 %v285
    %v1027 = vunpack.c.l.b16 %v286
    %v1028 = vunpack.c.h.b16 %v286
    %v1029 = vunpack.c.l.b16 %v287
    %v1030 = vunpack.c.h.b16 %v287
    %v1031 = vunpack.c.l.b16 %v288
    %v1032 = vunpack.c.h.b16 %v288
    %v1033 = vunpack.c.l.b16 %v289
    %v1034 = vunpack.c.h.b16 %v289
    %v1035 = vunpack.c.l.b16 %v290
    %v1036 = vunpack.c.h.b16 %v290
    %v1037 = vunpack.c.l.b16 %v291
    %v1038 = vunpack.c.h.b16 %v291
    %v1039 = vunpack.c.l.b16 %v292
    %v1040 = vunpack.c.h.b16 %v292
    %v1041 = vunpack.c.l.b16 %v293
    %v1042 = vunpack.c.h.b16 %v293
    %v1043 = vunpack.c.l.b16 %v294
    %v1044 = vunpack.c.h.b16 %v294
    %v1045 = vunpack.c.l.b16 %v295
    %v1046 = vunpack.c.h.b16 %v295
    %v1047 = vunpack.c.l.b16 %v296
    %v1048 = vunpack.c.h.b16 %v296
    %v1049 = vunpack.c.l.b16 %v297
    %v1050 = vunpack.c.h.b16 %v297
    %v1051 = vunpack.c.l.b16 %v298
    %v1052 = vunpack.c.h.b16 %v298
    %v1053 = vunpack.c.l.b16 %v299
    %v1054 = vunpack.c.h.b16 %v299
    %v1055 = vunpack.c.l.b16 %v300
    %v1056 = vunpack.c.h.b16 %v300
    %v1057 = vunpack.c.l.b16 %v301
    %v1058 = vunpack.c.h.b16 %v301
    %v1059 = vunpack.c.l.b16 %v302
    %v1060 = vunpack.c.h.b16 %v302
    %v1061 = vunpack.c.l.b16 %v303
    %v1062 = vunpack.c.h.b16 %v303
    %v1063 = vunpack.c.l.b16 %v304
    %v1064 = vunpack.c.h.b16 %v304
    %v1065 = vunpack.c.l.b16 %v305
    %v1066 = vunpack.c.h.b16 %v305
    %v1067 = vunpack.c.l.b16 %v306
    %v1068 = vunpack.c.h.b16 %v306
    %v1069 = vunpack.c.l.b16 %v307
    %v1070 = vunpack.c.h.b16 %v307
    %v1071 = vunpack.c.l.b16 %v308
    %v1072 = vunpack.c.h.b16 %v308
    %v1073 = vunpack.c.l.b16 %v309
    %v1074 = vunpack.c.h.b16 %v309
    %v1075 = vunpack.c.l.b16 %v310
    %v1076 = vunpack.c.h.b16 %v310
    %v1077 = vunpack.c.l.b16 %v311
    %v1078 = vunpack.c.h.b16 %v311
    %v1079 = vunpack.c.l.b16 %v312
    %v1080 = vunpack.c.h.b16 %v312
    %v1081 = vunpack.c.l.b16 %v313
    %v1082 = vunpack.c.h.b16 %v313
    %v1083 = vunpack.c.l.b16 %v314
    %v1084 = vunpack.c.h.b16 %v314
    %v1085 = vunpack.c.l.b16 %v315
    %v1086 = vunpack.c.h.b16 %v315
    %v1087 = vunpack.c.l.b16 %v316
    %v1088 = vunpack.c.h.b16 %v316
    %v1089 = vunpack.c.l.b16 %v317
    %v1090 = vunpack.c.h.b16 %v317
    %v1091 = vunpack.c.l.b16 %v318
    %v1092 = vunpack.c.h.b16 %v318
    %v1093 = vunpack.c.l.b16 %v319
    %v1094 = vunpack.c.h.b16 %v319
    %v1095 = vunpack.c.l.b16 %v320
    %v1096 = vunpack.c.h.b16 %v320
    %v1097 = vunpack.c.l.b16 %v321
    %v1098 = vunpack.c.h.b16 %v321
    %v1099 = vunpack.c.l.b16 %v322
    %v1100 = vunpack.c.h.b16 %v322
    %v1101 = vunpack.c.l.b16 %v323
    %v1102 = vunpack.c.h.b16 %v323
    %v1103 = vunpack.c.l.b16 %v324
    %v1104 = vunpack.c.h.b16 %v324
    %v1105 = vunpack.c.l.b16 %v325
    %v1106 = vunpack.c.h.b16 %v325
    %v1107 = vunpack.c.l.b16 %v326
    %v1108 = vunpack.c.h.b16 %v326
    %v1109 = vunpack.c.l.b16 %v327
    %v1110 = vunpack.c.h.b16 %v327
    %v1111 = vunpack.c.l.b16 %v328
    %v1112 = vunpack.c.h.b16 %v328
    %v1113 = vunpack.c.l.b16 %v329
    %v1114 = vunpack.c.h.b16 %v329
    %v1115 = vunpack.c.l.b16 %v330
    %v1116 = vunpack.c.h.b16 %v330
    %v1117 = vunpack.c.l.b16 %v331
    %v1118 = vunpack.c.h.b16 %v331
    %v1119 = vunpack.c.l.b16 %v332
    %v1120 = vunpack.c.h.b16 %v332
    %v1121 = vunpack.c.l.b16 %v333
    %v1122 = vunpack.c.h.b16 %v333
    %v1123 = vunpack.c.l.b16 %v334
    %v1124 = vunpack.c.h.b16 %v334
    %v1125 = vpack.c.b16 %v617, %v613
    %v1126 = vpack.c.b16 %v618, %v614
    %v1127 = vpack.c.b16 %v619, %v615
    %v1128 = vpack.c.b16 %v620, %v616
    %v1129 = vpack.c.b16 %v625, %v621
    %v1130 = vpack.c.b16 %v626, %v622
    %v1131 = vpack.c.b16 %v627, %v623
    %v1132 = vpack.c.b16 %v628, %v624
    %v1133 = vpack.c.b16 %v633, %v629
    %v1134 = vpack.c.b16 %v634, %v630
    %v1135 = vpack.c.b16 %v635, %v631
    %v1136 = vpack.c.b16 %v636, %v632
    %v1137 = vpack.c.b16 %v641, %v637
    %v1138 = vpack.c.b16 %v642, %v638
    %v1139 = vpack.c.b16 %v643, %v639
    %v1140 = vpack.c.b16 %v644, %v640
    %v1141 = vpack.c.b16 %v649, %v645
    %v1142 = vpack.c.b16 %v650, %v646
    %v1143 = vpack.c.b16 %v651, %v647
    %v1144 = vpack.c.b16 %v652, %v648
    %v1145 = vpack.c.b16 %v657, %v653
    %v1146 = vpack.c.b16 %v658, %v654
    %v1147 = vpack.c.b16 %v659, %v655
    %v1148 = vpack.c.b16 %v660, %v656
    %v1149 = vpack.c.b16 %v665, %v661
    %v1150 = vpack.c.b16 %v666, %v662
    %v1151 = vpack.c.b16 %v667, %v663
    %v1152 = vpack.c.b16 %v668, %v664
    %v1153 = vpack.c.b16 %v673, %v669
    %v1154 = vpack.c.b16 %v674, %v670
    %v1155 = vpack.c.b16 %v675, %v671
    %v1156 = vpack.c.b16 %v676, %v672
    %v1157 = vpack.c.b16 %v681, %v677
    %v1158 = vpack.c.b16 %v682, %v678
    %v1159 = vpack.c.b16 %v683, %v679
    %v1160 = vpack.c.b16 %v684, %v680
    %v1161 = vpack.c.b16 %v689, %v685
    %v1162 = vpack.c.b16 %v690, %v686
    %v1163 = vpack.c.b16 %v691, %v687
    %v1164 = vpack.c.b16 %v692, %v688
    %v1165 = vpack.c.b16 %v697, %v693
    %v1166 = vpack.c.b16 %v698, %v694
    %v1167 = vpack.c.b16 %v699, %v695
    %v1168 = vpack.c.b16 %v700, %v696
    %v1169 = vpack.c.b16 %v705, %v701
    %v1170 = vpack.c.b16 %v706, %v702
    %v1171 = vpack.c.b16 %v707, %v703
    %v1172 = vpack.c.b16 %v708, %v704
    %v1173 = vpack.c.b16 %v713, %v709
    %v1174 = vpack.c.b16 %v714, %v710
    %v1175 = vpack.c.b16 %v715, %v711
    %v1176 = vpack.c.b16 %v716, %v712
    %v1177 = vpack.c.b16 %v721, %v717
    %v1178 = vpack.c.b16 %v722, %v718
    %v1179 = vpack.c.b16 %v723, %v719
    %v1180 = vpack.c.b16 %v724, %v720
    %v1181 = vpack.c.b16 %v729, %v725
    %v1182 = vpack.c.b16 %v730, %v726
    %v1183 = vpack.c.b16 %v731, %v727
    %v1184 = vpack.c.b16 %v732, %v728
    %v1185 = vpack.c.b16 %v737, %v733
    %v1186 = vpack.c.b16 %v738, %v734
    %v1187 = vpack.c.b16 %v739, %v735
    %v1188 = vpack.c.b16 %v740, %v736
    %v1189 = vpack.c.b16 %v745, %v741
    %v1190 = vpack.c.b16 %v746, %v742
    %v1191 = vpack.c.b16 %v747, %v743
    %v1192 = vpack.c.b16 %v748, %v744
    %v1193 = vpack.c.b16 %v753, %v749
    %v1194 = vpack.c.b16 %v754, %v750
    %v1195 = vpack.c.b16 %v755, %v751
    %v1196 = vpack.c.b16 %v756, %v752
    %v1197 = vpack.c.b16 %v761, %v757
    %v1198 = vpack.c.b16 %v762, %v758
    %v1199 = vpack.c.b16 %v763, %v759
    %v1200 = vpack.c.b16 %v764, %v760
    %v1201 = vpack.c.b16 %v769, %v765
    %v1202 = vpack.c.b16 %v770, %v766
    %v1203 = vpack.c.b16 %v771, %v767
    %v1204 = vpack.c.b16 %v772, %v768
    %v1205 = vpack.c.b16 %v777, %v773
    %v1206 = vpack.c.b16 %v778, %v774
    %v1207 = vpack.c.b16 %v779, %v775
    %v1208 = vpack.c.b16 %v780, %v776
    %v1209 = vpack.c.b16 %v785, %v781
    %v1210 = vpack.c.b16 %v786, %v782
    %v1211 = vpack.c.b16 %v787, %v783
    %v1212 = vpack.c.b16 %v788, %v784
    %v1213 = vpack.c.b16 %v793, %v789
    %v1214 = vpack.c.b16 %v794, %v790
    %v1215 = vpack.c.b16 %v795, %v791
    %v1216 = vpack.c.b16 %v796, %v792
    %v1217 = vpack.c.b16 %v801, %v797
    %v1218 = vpack.c.b16 %v802, %v798
    %v1219 = vpack.c.b16 %v803, %v799
    %v1220 = vpack.c.b16 %v804, %v800
    %v1221 = vpack.c.b16 %v809, %v805
    %v1222 = vpack.c.b16 %v810, %v806
    %v1223 = vpack.c.b16 %v811, %v807
    %v1224 = vpack.c.b16 %v812, %v808
    %v1225 = vpack.c.b16 %v817, %v813
    %v1226 = vpack.c.b16 %v818, %v814
    %v1227 = vpack.c.b16 %v819, %v815
    %v1228 = vpack.c.b16 %v820, %v816
    %v1229 = vpack.c.b16 %v825, %v821
    %v1230 = vpack.c.b16 %v826, %v822
    %v1231 = vpack.c.b16 %v827, %v823
    %v1232 = vpack.c.b16 %v828, %v824
    %v1233 = vpack.c.b16 %v833, %v829
    %v1234 = vpack.c.b16 %v834, %v830
    %v1235 = vpack.c.b16 %v835, %v831
    %v1236 = vpack.c.b16 %v836, %v832
    %v1237 = vpack.c.b16 %v841, %v837
    %v1238 = vpack.c.b16 %v842, %v838
    %v1239 = vpack.c.b16 %v843, %v839
    %v1240 = vpack.c.b16 %v844, %v840
    %v1241 = vpack.c.b16 %v849, %v845
    %v1242 = vpack.c.b16 %v850, %v846
    %v1243 = vpack.c.b16 %v851, %v847
    %v1244 = vpack.c.b16 %v852, %v848
    %v1245 = vpack.c.b16 %v857, %v853
    %v1246 = vpack.c.b16 %v858, %v854
    %v1247 = vpack.c.b16 %v859, %v855
    %v1248 = vpack.c.b16 %v860, %v856
    %v1249 = vpack.c.b16 %v865, %v861
    %v1250 = vpack.c.b16 %v866, %v862
    %v1251 = vpack.c.b16 %v867, %v863
    %v1252 = vpack.c.b16 %v868, %v864
    %v1253 = vpack.c.b16 %v873, %v869
    %v1254 = vpack.c.b16 %v874, %v870
    %v1255 = vpack.c.b16 %v875, %v871
    %v1256 = vpack.c.b16 %v876, %v872
    %v1257 = vpack.c.b16 %v881, %v877
    %v1258 = vpack.c.b16 %v882, %v878
    %v1259 = vpack.c.b16 %v883, %v879
    %v1260 = vpack.c.b16 %v884, %v880
    %v1261 = vpack.c.b16 %v889, %v885
    %v1262 = vpack.c.b16 %v890, %v886
    %v1263 = vpack.c.b16 %v891, %v887
    %v1264 = vpack.c.b16 %v892, %v888
    %v1265 = vpack.c.b16 %v897, %v893
    %v1266 = vpack.c.b16 %v898, %v894
    %v1267 = vpack.c.b16 %v899, %v895
    %v1268 = vpack.c.b16 %v900, %v896
    %v1269 = vpack.c.b16 %v905, %v901
    %v1270 = vpack.c.b16 %v906, %v902
    %v1271 = vpack.c.b16 %v907, %v903
    %v1272 = vpack.c.b16 %v908, %v904
    %v1273 = vpack.c.b16 %v913, %v909
    %v1274 = vpack.c.b16 %v914, %v910
    %v1275 = vpack.c.b16 %v915, %v911
    %v1276 = vpack.c.b16 %v916, %v912
    %v1277 = vpack.c.b16 %v921, %v917
    %v1278 = vpack.c.b16 %v922, %v918
    %v1279 = vpack.c.b16 %v923, %v919
    %v1280 = vpack.c.b16 %v924, %v920
    %v1281 = vpack.c.b16 %v929, %v925
    %v1282 = vpack.c.b16 %v930, %v926
    %v1283 = vpack.c.b16 %v931, %v927
    %v1284 = vpack.c.b16 %v932, %v928
    %v1285 = vpack.c.b16 %v937, %v933
    %v1286 = vpack.c.b16 %v938, %v934
    %v1287 = vpack.c.b16 %v939, %v935
    %v1288 = vpack.c.b16 %v940, %v936
    %v1289 = vpack.c.b16 %v945, %v941
    %v1290 = vpack.c.b16 %v946, %v942
    %v1291 = vpack.c.b16 %v947, %v943
    %v1292 = vpack.c.b16 %v948, %v944
    %v1293 = vpack.c.b16 %v953, %v949
    %v1294 = vpack.c.b16 %v954, %v950
    %v1295 = vpack.c.b16 %v955, %v951
    %v1296 = vpack.c.b16 %v956, %v952
    %v1297 = vpack.c.b16 %v961, %v957
    %v1298 = vpack.c.b16 %v962, %v958
    %v1299 = vpack.c.b16 %v963, %v959
    %v1300 = vpack.c.b16 %v964, %v960
    %v1301 = vpack.c.b16 %v969, %v965
    %v1302 = vpack.c.b16 %v970, %v966
    %v1303 = vpack.c.b16 %v971, %v967
    %v1304 = vpack.c.b16 %v972, %v968
    %v1305 = vpack.c.b16 %v977, %v973
    %v1306 = vpack.c.b16 %v978, %v974
    %v1307 = vpack.c.b16 %v979, %v975
    %v1308 = vpack.c.b16 %v980, %v976
    %v1309 = vpack.c.b16 %v985, %v981
    %v1310 = vpack.c.b16 %v986, %v982
    %v1311 = vpack.c.b16 %v987, %v983
    %v1312 = vpack.c.b16 %v988, %v984
    %v1313 = vpack.c.b16 %v993, %v989
    %v1314 = vpack.c.b16 %v994, %v990
    %v1315 = vpack.c.b16 %v995, %v991
    %v1316 = vpack.c.b16 %v996, %v992
    %v1317 = vpack.c.b16 %v1001, %v997
    %v1318 = vpack.c.b16 %v1002, %v998
    %v1319 = vpack.c.b16 %v1003, %v999
    %v1320 = vpack.c.b16 %v1004, %v1000
    %v1321 = vpack.c.b16 %v1009, %v1005
    %v1322 = vpack.c.b16 %v1010, %v1006
    %v1323 = vpack.c.b16 %v1011, %v1007
    %v1324 = vpack.c.b16 %v1012, %v1008
    %v1325 = vpack.c.b16 %v1017, %v1013
    %v1326 = vpack.c.b16 %v1018, %v1014
    %v1327 = vpack.c.b16 %v1019, %v1015
    %v1328 = vpack.c.b16 %v1020, %v1016
    %v1329 = vpack.c.b16 %v1025, %v1021
    %v1330 = vpack.c.b16 %v1026, %v1022
    %v1331 = vpack.c.b16 %v1027, %v1023
    %v1332 = vpack.c.b16 %v1028, %v1024
    %v1333 = vpack.c.b16 %v1033, %v1029
    %v1334 = vpack.c.b16 %v1034, %v1030
    %v1335 = vpack.c.b16 %v1035, %v1031
    %v1336 = vpack.c.b16 %v1036, %v1032
    %v1337 = vpack.c.b16 %v1041, %v1037
    %v1338 = vpack.c.b16 %v1042, %v1038
    %v1339 = vpack.c.b16 %v1043, %v1039
    %v1340 = vpack.c.b16 %v1044, %v1040
    %v1341 = vpack.c.b16 %v1049, %v1045
    %v1342 = vpack.c.b16 %v1050, %v1046
    %v1343 = vpack.c.b16 %v1051, %v1047
    %v1344 = vpack.c.b16 %v1052, %v1048
    %v1345 = vpack.c.b16 %v1057, %v1053
    %v1346 = vpack.c.b16 %v1058, %v1054
    %v1347 = vpack.c.b16 %v1059, %v1055
    %v1348 = vpack.c.b16 %v1060, %v1056
    %v1349 = vpack.c.b16 %v1065, %v1061
    %v1350 = vpack.c.b16 %v1066, %v1062
    %v1351 = vpack.c.b16 %v1067, %v1063
    %v1352 = vpack.c.b16 %v1068, %v1064
    %v1353 = vpack.c.b16 %v1073, %v1069
    %v1354 = vpack.c.b16 %v1074, %v1070
    %v1355 = vpack.c.b16 %v1075, %v1071
    %v1356 = vpack.c.b16 %v1076, %v1072
    %v1357 = vpack.c.b16 %v1081, %v1077
    %v1358 = vpack.c.b16 %v1082, %v1078
    %v1359 = vpack.c.b16 %v1083, %v1079
    %v1360 = vpack.c.b16 %v1084, %v1080
    %v1361 = vpack.c.b16 %v1089, %v1085
    %v1362 = vpack.c.b16 %v1090, %v1086
    %v1363 = vpack.c.b16 %v1091, %v1087
    %v1364 = vpack.c.b16 %v1092, %v1088
    %v1365 = vpack.c.b16 %v1097, %v1093
    %v1366 = vpack.c.b16 %v1098, %v1094
    %v1367 = vpack.c.b16 %v1099, %v1095
    %v1368 = vpack.c.b16 %v1100, %v1096
    %v1369 = vpack.c.b16 %v1105, %v1101
    %v1370 = vpack.c.b16 %v1106, %v1102
    %v1371 = vpack.c.b16 %v1107, %v1103
    %v1372 = vpack.c.b16 %v1108, %v1104
    %v1373 = vpack.c.b16 %v1113, %v1109
    %v1374 = vpack.c.b16 %v1114, %v1110
    %v1375 = vpack.c.b16 %v1115, %v1111
    %v1376 = vpack.c.b16 %v1116, %v1112
    %v1377 = vpack.c.b16 %v1121, %v1117
    %v1378 = vpack.c.b16 %v1122, %v1118
    %v1379 = vpack.c.b16 %v1123, %v1119
    %v1380 = vpack.c.b16 %v1124, %v1120
    %1637 = vmatprep.subr.bf16.mxu0 %v1126
    %1638 = vmatpush1.bf16.msra.mxu0 %v1125
    %1639 = vmatprep.subr.bf16.mxu0 %v1130
    %1640 = vmatpush1.bf16.msra.mxu0 %v1129
    %1641 = vmatprep.subr.bf16.mxu0 %v1134
    %1642 = vmatpush1.bf16.msra.mxu0 %v1133
    %1643 = vmatprep.subr.bf16.mxu0 %v1138
    %1644 = vmatpush1.bf16.msra.mxu0 %v1137
    %1645 = vmatprep.subr.bf16.mxu0 %v1142
    %1646 = vmatpush1.bf16.msra.mxu0 %v1141
    %1647 = vmatprep.subr.bf16.mxu0 %v1146
    %1648 = vmatpush1.bf16.msra.mxu0 %v1145
    %1649 = vmatprep.subr.bf16.mxu0 %v1150
    %1650 = vmatpush1.bf16.msra.mxu0 %v1149
    %1651 = vmatprep.subr.bf16.mxu0 %v1154
    %1652 = vmatpush1.bf16.msra.mxu0 %v1153
    %1653 = vmatprep.subr.bf16.mxu0 %v1158
    %1654 = vmatpush1.bf16.msra.mxu0 %v1157
    %1655 = vmatprep.subr.bf16.mxu0 %v1162
    %1656 = vmatpush1.bf16.msra.mxu0 %v1161
    %1657 = vmatprep.subr.bf16.mxu0 %v1166
    %1658 = vmatpush1.bf16.msra.mxu0 %v1165
    %1659 = vmatprep.subr.bf16.mxu0 %v1170
    %1660 = vmatpush1.bf16.msra.mxu0 %v1169
    %1661 = vmatprep.subr.bf16.mxu0 %v1174
    %1662 = vmatpush1.bf16.msra.mxu0 %v1173
    %1663 = vmatprep.subr.bf16.mxu0 %v1178
    %1664 = vmatpush1.bf16.msra.mxu0 %v1177
    %1665 = vmatprep.subr.bf16.mxu0 %v1182
    %1666 = vmatpush1.bf16.msra.mxu0 %v1181
    %1667 = vmatprep.subr.bf16.mxu0 %v1186
    %1668 = vmatpush1.bf16.msra.mxu0 %v1185
    %1669 = vmatprep.mubr.bf16.mxu0 %v72
    %1670 = vmatmul.mubr.bf16.gmra.mrb[0].mxu0 %v71
    %v1671 = vpop.f32.mrb[0].mxu0
    %v1672 = vadd.f32 %v340, %v1671
    %v1673 = vpop.f32.mrb[0].mxu0
    %v1674 = vadd.f32 %v344, %v1673
    %v1675 = vpop.f32.mrb[0].mxu0
    %v1676 = vadd.f32 %v340, %v1675
    %v1677 = vpop.f32.mrb[0].mxu0
    %v1678 = vadd.f32 %v344, %v1677
    %1679 = vdwg.mxu0
    %1680 = vmatprep.subr.bf16.mxu0 %v1190
    %1681 = vmatpush1.bf16.msra.mxu0 %v1189
    %1682 = vmatprep.subr.bf16.mxu0 %v1194
    %1683 = vmatpush1.bf16.msra.mxu0 %v1193
    %1684 = vmatprep.subr.bf16.mxu0 %v1198
    %1685 = vmatpush1.bf16.msra.mxu0 %v1197
    %1686 = vmatprep.subr.bf16.mxu0 %v1202
    %1687 = vmatpush1.bf16.msra.mxu0 %v1201
    %1688 = vmatprep.subr.bf16.mxu0 %v1206
    %1689 = vmatpush1.bf16.msra.mxu0 %v1205
    %1690 = vmatprep.subr.bf16.mxu0 %v1210
    %1691 = vmatpush1.bf16.msra.mxu0 %v1209
    %1692 = vmatprep.subr.bf16.mxu0 %v1214
    %1693 = vmatpush1.bf16.msra.mxu0 %v1213
    %1694 = vmatprep.subr.bf16.mxu0 %v1218
    %1695 = vmatpush1.bf16.msra.mxu0 %v1217
    %1696 = vmatprep.subr.bf16.mxu0 %v1222
    %1697 = vmatpush1.bf16.msra.mxu0 %v1221
    %1698 = vmatprep.subr.bf16.mxu0 %v1226
    %1699 = vmatpush1.bf16.msra.mxu0 %v1225
    %1700 = vmatprep.subr.bf16.mxu0 %v1230
    %1701 = vmatpush1.bf16.msra.mxu0 %v1229
    %1702 = vmatprep.subr.bf16.mxu0 %v1234
    %1703 = vmatpush1.bf16.msra.mxu0 %v1233
    %1704 = vmatprep.subr.bf16.mxu0 %v1238
    %1705 = vmatpush1.bf16.msra.mxu0 %v1237
    %1706 = vmatprep.subr.bf16.mxu0 %v1242
    %1707 = vmatpush1.bf16.msra.mxu0 %v1241
    %1708 = vmatprep.subr.bf16.mxu0 %v1246
    %1709 = vmatpush1.bf16.msra.mxu0 %v1245
    %1710 = vmatprep.subr.bf16.mxu0 %v1250
    %1711 = vmatpush1.bf16.msra.mxu0 %v1249
    %1712 = vmatprep.mubr.bf16.mxu0 %v74
    %1713 = vmatmul.mubr.bf16.gmra.mrb[0].mxu0 %v73
    %v1714 = vpop.f32.mrb[0].mxu0
    %v1715 = vadd.f32 %v1672, %v1714
    %v1716 = vpop.f32.mrb[0].mxu0
    %v1717 = vadd.f32 %v1674, %v1716
    %v1718 = vpop.f32.mrb[0].mxu0
    %v1719 = vadd.f32 %v1676, %v1718
    %v1720 = vpop.f32.mrb[0].mxu0
    %v1721 = vadd.f32 %v1678, %v1720
    %1722 = vdwg.mxu0
    %1723 = vmatprep.subr.bf16.mxu0 %v1254
    %1724 = vmatpush1.bf16.msra.mxu0 %v1253
    %1725 = vmatprep.subr.bf16.mxu0 %v1258
    %1726 = vmatpush1.bf16.msra.mxu0 %v1257
    %1727 = vmatprep.subr.bf16.mxu0 %v1262
    %1728 = vmatpush1.bf16.msra.mxu0 %v1261
    %1729 = vmatprep.subr.bf16.mxu0 %v1266
    %1730 = vmatpush1.bf16.msra.mxu0 %v1265
    %1731 = vmatprep.subr.bf16.mxu0 %v1270
    %1732 = vmatpush1.bf16.msra.mxu0 %v1269
    %1733 = vmatprep.subr.bf16.mxu0 %v1274
    %1734 = vmatpush1.bf16.msra.mxu0 %v1273
    %1735 = vmatprep.subr.bf16.mxu0 %v1278
    %1736 = vmatpush1.bf16.msra.mxu0 %v1277
    %1737 = vmatprep.subr.bf16.mxu0 %v1282
    %1738 = vmatpush1.bf16.msra.mxu0 %v1281
    %1739 = vmatprep.subr.bf16.mxu0 %v1286
    %1740 = vmatpush1.bf16.msra.mxu0 %v1285
    %1741 = vmatprep.subr.bf16.mxu0 %v1290
    %1742 = vmatpush1.bf16.msra.mxu0 %v1289
    %1743 = vmatprep.subr.bf16.mxu0 %v1294
    %1744 = vmatpush1.bf16.msra.mxu0 %v1293
    %1745 = vmatprep.subr.bf16.mxu0 %v1298
    %1746 = vmatpush1.bf16.msra.mxu0 %v1297
    %1747 = vmatprep.subr.bf16.mxu0 %v1302
    %1748 = vmatpush1.bf16.msra.mxu0 %v1301
    %1749 = vmatprep.subr.bf16.mxu0 %v1306
    %1750 = vmatpush1.bf16.msra.mxu0 %v1305
    %1751 = vmatprep.subr.bf16.mxu0 %v1310
    %1752 = vmatpush1.bf16.msra.mxu0 %v1309
    %1753 = vmatprep.subr.bf16.mxu0 %v1314
    %1754 = vmatpush1.bf16.msra.mxu0 %v1313
    %1755 = vmatprep.mubr.bf16.mxu0 %v76
    %1756 = vmatmul.mubr.bf16.gmra.mrb[0].mxu0 %v75
    %v1757 = vpop.f32.mrb[0].mxu0
    %v1758 = vadd.f32 %v1715, %v1757
    %v1759 = vpop.f32.mrb[0].mxu0
    %v1760 = vadd.f32 %v1717, %v1759
    %v1761 = vpop.f32.mrb[0].mxu0
    %v1762 = vadd.f32 %v1719, %v1761
    %v1763 = vpop.f32.mrb[0].mxu0
    %v1764 = vadd.f32 %v1721, %v1763
    %1765 = vdwg.mxu0
    %1766 = vmatprep.subr.bf16.mxu0 %v1318
    %1767 = vmatpush1.bf16.msra.mxu0 %v1317
    %1768 = vmatprep.subr.bf16.mxu0 %v1322
    %1769 = vmatpush1.bf16.msra.mxu0 %v1321
    %1770 = vmatprep.subr.bf16.mxu0 %v1326
    %1771 = vmatpush1.bf16.msra.mxu0 %v1325
    %1772 = vmatprep.subr.bf16.mxu0 %v1330
    %1773 = vmatpush1.bf16.msra.mxu0 %v1329
    %1774 = vmatprep.subr.bf16.mxu0 %v1334
    %1775 = vmatpush1.bf16.msra.mxu0 %v1333
    %1776 = vmatprep.subr.bf16.mxu0 %v1338
    %1777 = vmatpush1.bf16.msra.mxu0 %v1337
    %1778 = vmatprep.subr.bf16.mxu0 %v1342
    %1779 = vmatpush1.bf16.msra.mxu0 %v1341
    %1780 = vmatprep.subr.bf16.mxu0 %v1346
    %1781 = vmatpush1.bf16.msra.mxu0 %v1345
    %1782 = vmatprep.subr.bf16.mxu0 %v1350
    %1783 = vmatpush1.bf16.msra.mxu0 %v1349
    %1784 = vmatprep.subr.bf16.mxu0 %v1354
    %1785 = vmatpush1.bf16.msra.mxu0 %v1353
    %1786 = vmatprep.subr.bf16.mxu0 %v1358
    %1787 = vmatpush1.bf16.msra.mxu0 %v1357
    %1788 = vmatprep.subr.bf16.mxu0 %v1362
    %1789 = vmatpush1.bf16.msra.mxu0 %v1361
    %1790 = vmatprep.subr.bf16.mxu0 %v1366
    %1791 = vmatpush1.bf16.msra.mxu0 %v1365
    %1792 = vmatprep.subr.bf16.mxu0 %v1370
    %1793 = vmatpush1.bf16.msra.mxu0 %v1369
    %1794 = vmatprep.subr.bf16.mxu0 %v1374
    %1795 = vmatpush1.bf16.msra.mxu0 %v1373
    %1796 = vmatprep.subr.bf16.mxu0 %v1378
    %1797 = vmatpush1.bf16.msra.mxu0 %v1377
    %1798 = vmatprep.mubr.bf16.mxu0 %v78
    %1799 = vmatmul.mubr.bf16.gmra.mrb[0].mxu0 %v77
    %v1800 = vpop.f32.mrb[0].mxu0
    %v1801 = vadd.f32 %v1758, %v1800
    %v1802 = vpop.f32.mrb[0].mxu0
    %v1803 = vadd.f32 %v1760, %v1802
    %v1804 = vpop.f32.mrb[0].mxu0
    %v1805 = vadd.f32 %v1762, %v1804
    %v1806 = vpop.f32.mrb[0].mxu0
    %v1807 = vadd.f32 %v1764, %v1806
    %1808 = vdwg.mxu0
    %1809 = vmatprep.subr.bf16.mxu0 %v1128
    %1810 = vmatpush1.bf16.msra.mxu0 %v1127
    %1811 = vmatprep.subr.bf16.mxu0 %v1132
    %1812 = vmatpush1.bf16.msra.mxu0 %v1131
    %1813 = vmatprep.subr.bf16.mxu0 %v1136
    %1814 = vmatpush1.bf16.msra.mxu0 %v1135
    %1815 = vmatprep.subr.bf16.mxu0 %v1140
    %1816 = vmatpush1.bf16.msra.mxu0 %v1139
    %1817 = vmatprep.subr.bf16.mxu0 %v1144
    %1818 = vmatpush1.bf16.msra.mxu0 %v1143
    %1819 = vmatprep.subr.bf16.mxu0 %v1148
    %1820 = vmatpush1.bf16.msra.mxu0 %v1147
    %1821 = vmatprep.subr.bf16.mxu0 %v1152
    %1822 = vmatpush1.bf16.msra.mxu0 %v1151
    %1823 = vmatprep.subr.bf16.mxu0 %v1156
    %1824 = vmatpush1.bf16.msra.mxu0 %v1155
    %1825 = vmatprep.subr.bf16.mxu0 %v1160
    %1826 = vmatpush1.bf16.msra.mxu0 %v1159
    %1827 = vmatprep.subr.bf16.mxu0 %v1164
    %1828 = vmatpush1.bf16.msra.mxu0 %v1163
    %1829 = vmatprep.subr.bf16.mxu0 %v1168
    %1830 = vmatpush1.bf16.msra.mxu0 %v1167
    %1831 = vmatprep.subr.bf16.mxu0 %v1172
    %1832 = vmatpush1.bf16.msra.mxu0 %v1171
    %1833 = vmatprep.subr.bf16.mxu0 %v1176
    %1834 = vmatpush1.bf16.msra.mxu0 %v1175
    %1835 = vmatprep.subr.bf16.mxu0 %v1180
    %1836 = vmatpush1.bf16.msra.mxu0 %v1179
    %1837 = vmatprep.subr.bf16.mxu0 %v1184
    %1838 = vmatpush1.bf16.msra.mxu0 %v1183
    %1839 = vmatprep.subr.bf16.mxu0 %v1188
    %1840 = vmatpush1.bf16.msra.mxu0 %v1187
    %1841 = vmatprep.mubr.bf16.mxu0 %v72
    %1842 = vmatmul.mubr.bf16.gmra.mrb[0].mxu0 %v71
    %v1843 = vpop.f32.mrb[0].mxu0
    %v1844 = vadd.f32 %v348, %v1843
    %v1845 = vpop.f32.mrb[0].mxu0
    %v1846 = vadd.f32 %v352, %v1845
    %v1847 = vpop.f32.mrb[0].mxu0
    %v1848 = vadd.f32 %v348, %v1847
    %v1849 = vpop.f32.mrb[0].mxu0
    %v1850 = vadd.f32 %v352, %v1849
    %1851 = vdwg.mxu0
    %1852 = vmatprep.subr.bf16.mxu0 %v1192
    %1853 = vmatpush1.bf16.msra.mxu0 %v1191
    %1854 = vmatprep.subr.bf16.mxu0 %v1196
    %1855 = vmatpush1.bf16.msra.mxu0 %v1195
    %1856 = vmatprep.subr.bf16.mxu0 %v1200
    %1857 = vmatpush1.bf16.msra.mxu0 %v1199
    %1858 = vmatprep.subr.bf16.mxu0 %v1204
    %1859 = vmatpush1.bf16.msra.mxu0 %v1203
    %1860 = vmatprep.subr.bf16.mxu0 %v1208
    %1861 = vmatpush1.bf16.msra.mxu0 %v1207
    %1862 = vmatprep.subr.bf16.mxu0 %v1212
    %1863 = vmatpush1.bf16.msra.mxu0 %v1211
    %1864 = vmatprep.subr.bf16.mxu0 %v1216
    %1865 = vmatpush1.bf16.msra.mxu0 %v1215
    %1866 = vmatprep.subr.bf16.mxu0 %v1220
    %1867 = vmatpush1.bf16.msra.mxu0 %v1219
    %1868 = vmatprep.subr.bf16.mxu0 %v1224
    %1869 = vmatpush1.bf16.msra.mxu0 %v1223
    %1870 = vmatprep.subr.bf16.mxu0 %v1228
    %1871 = vmatpush1.bf16.msra.mxu0 %v1227
    %1872 = vmatprep.subr.bf16.mxu0 %v1232
    %1873 = vmatpush1.bf16.msra.mxu0 %v1231
    %1874 = vmatprep.subr.bf16.mxu0 %v1236
    %1875 = vmatpush1.bf16.msra.mxu0 %v1235
    %1876 = vmatprep.subr.bf16.mxu0 %v1240
    %1877 = vmatpush1.bf16.msra.mxu0 %v1239
    %1878 = vmatprep.subr.bf16.mxu0 %v1244
    %1879 = vmatpush1.bf16.msra.mxu0 %v1243
    %1880 = vmatprep.subr.bf16.mxu0 %v1248
    %1881 = vmatpush1.bf16.msra.mxu0 %v1247
    %1882 = vmatprep.subr.bf16.mxu0 %v1252
    %1883 = vmatpush1.bf16.msra.mxu0 %v1251
    %1884 = vmatprep.mubr.bf16.mxu0 %v74
    %1885 = vmatmul.mubr.bf16.gmra.mrb[0].mxu0 %v73
    %v1886 = vpop.f32.mrb[0].mxu0
    %v1887 = vadd.f32 %v1844, %v1886
    %v1888 = vpop.f32.mrb[0].mxu0
    %v1889 = vadd.f32 %v1846, %v1888
    %v1890 = vpop.f32.mrb[0].mxu0
    %v1891 = vadd.f32 %v1848, %v1890
    %v1892 = vpop.f32.mrb[0].mxu0
    %v1893 = vadd.f32 %v1850, %v1892
    %1894 = vdwg.mxu0
    %1895 = vmatprep.subr.bf16.mxu0 %v1256
    %1896 = vmatpush1.bf16.msra.mxu0 %v1255
    %1897 = vmatprep.subr.bf16.mxu0 %v1260
    %1898 = vmatpush1.bf16.msra.mxu0 %v1259
    %1899 = vmatprep.subr.bf16.mxu0 %v1264
    %1900 = vmatpush1.bf16.msra.mxu0 %v1263
    %1901 = vmatprep.subr.bf16.mxu0 %v1268
    %1902 = vmatpush1.bf16.msra.mxu0 %v1267
    %1903 = vmatprep.subr.bf16.mxu0 %v1272
    %1904 = vmatpush1.bf16.msra.mxu0 %v1271
    %1905 = vmatprep.subr.bf16.mxu0 %v1276
    %1906 = vmatpush1.bf16.msra.mxu0 %v1275
    %1907 = vmatprep.subr.bf16.mxu0 %v1280
    %1908 = vmatpush1.bf16.msra.mxu0 %v1279
    %1909 = vmatprep.subr.bf16.mxu0 %v1284
    %1910 = vmatpush1.bf16.msra.mxu0 %v1283
    %1911 = vmatprep.subr.bf16.mxu0 %v1288
    %1912 = vmatpush1.bf16.msra.mxu0 %v1287
    %1913 = vmatprep.subr.bf16.mxu0 %v1292
    %1914 = vmatpush1.bf16.msra.mxu0 %v1291
    %1915 = vmatprep.subr.bf16.mxu0 %v1296
    %1916 = vmatpush1.bf16.msra.mxu0 %v1295
    %1917 = vmatprep.subr.bf16.mxu0 %v1300
    %1918 = vmatpush1.bf16.msra.mxu0 %v1299
    %1919 = vmatprep.subr.bf16.mxu0 %v1304
    %1920 = vmatpush1.bf16.msra.mxu0 %v1303
    %1921 = vmatprep.subr.bf16.mxu0 %v1308
    %1922 = vmatpush1.bf16.msra.mxu0 %v1307
    %1923 = vmatprep.subr.bf16.mxu0 %v1312
    %1924 = vmatpush1.bf16.msra.mxu0 %v1311
    %1925 = vmatprep.subr.bf16.mxu0 %v1316
    %1926 = vmatpush1.bf16.msra.mxu0 %v1315
    %1927 = vmatprep.mubr.bf16.mxu0 %v76
    %1928 = vmatmul.mubr.bf16.gmra.mrb[0].mxu0 %v75
    %v1929 = vpop.f32.mrb[0].mxu0
    %v1930 = vadd.f32 %v1887, %v1929
    %v1931 = vpop.f32.mrb[0].mxu0
    %v1932 = vadd.f32 %v1889, %v1931
    %v1933 = vpop.f32.mrb[0].mxu0
    %v1934 = vadd.f32 %v1891, %v1933
    %v1935 = vpop.f32.mrb[0].mxu0
    %v1936 = vadd.f32 %v1893, %v1935
    %1937 = vdwg.mxu0
    %1938 = vmatprep.subr.bf16.mxu0 %v1320
    %1939 = vmatpush1.bf16.msra.mxu0 %v1319
    %1940 = vmatprep.subr.bf16.mxu0 %v1324
    %1941 = vmatpush1.bf16.msra.mxu0 %v1323
    %1942 = vmatprep.subr.bf16.mxu0 %v1328
    %1943 = vmatpush1.bf16.msra.mxu0 %v1327
    %1944 = vmatprep.subr.bf16.mxu0 %v1332
    %1945 = vmatpush1.bf16.msra.mxu0 %v1331
    %1946 = vmatprep.subr.bf16.mxu0 %v1336
    %1947 = vmatpush1.bf16.msra.mxu0 %v1335
    %1948 = vmatprep.subr.bf16.mxu0 %v1340
    %1949 = vmatpush1.bf16.msra.mxu0 %v1339
    %1950 = vmatprep.subr.bf16.mxu0 %v1344
    %1951 = vmatpush1.bf16.msra.mxu0 %v1343
    %1952 = vmatprep.subr.bf16.mxu0 %v1348
    %1953 = vmatpush1.bf16.msra.mxu0 %v1347
    %1954 = vmatprep.subr.bf16.mxu0 %v1352
    %1955 = vmatpush1.bf16.msra.mxu0 %v1351
    %1956 = vmatprep.subr.bf16.mxu0 %v1356
    %1957 = vmatpush1.bf16.msra.mxu0 %v1355
    %1958 = vmatprep.subr.bf16.mxu0 %v1360
    %1959 = vmatpush1.bf16.msra.mxu0 %v1359
    %1960 = vmatprep.subr.bf16.mxu0 %v1364
    %1961 = vmatpush1.bf16.msra.mxu0 %v1363
    %1962 = vmatprep.subr.bf16.mxu0 %v1368
    %1963 = vmatpush1.bf16.msra.mxu0 %v1367
    %1964 = vmatprep.subr.bf16.mxu0 %v1372
    %1965 = vmatpush1.bf16.msra.mxu0 %v1371
    %1966 = vmatprep.subr.bf16.mxu0 %v1376
    %1967 = vmatpush1.bf16.msra.mxu0 %v1375
    %1968 = vmatprep.subr.bf16.mxu0 %v1380
    %1969 = vmatpush1.bf16.msra.mxu0 %v1379
    %1970 = vmatprep.mubr.bf16.mxu0 %v78
    %1971 = vmatmul.mubr.bf16.gmra.mrb[0].mxu0 %v77
    %v1972 = vpop.f32.mrb[0].mxu0
    %v1973 = vadd.f32 %v1930, %v1972
    %v1974 = vpop.f32.mrb[0].mxu0
    %v1975 = vadd.f32 %v1932, %v1974
    %v1976 = vpop.f32.mrb[0].mxu0
    %v1977 = vadd.f32 %v1934, %v1976
    %v1978 = vpop.f32.mrb[0].mxu0
    %v1979 = vadd.f32 %v1936, %v1978
    %1980 = vdwg.mxu0
    %v1981 = vmax.f32 %v1801, 0.0
    %v1982 = vmax.f32 %v1803, 0.0
    %v1983 = vmax.f32 %v1973, 0.0
    %v1984 = vmax.f32 %v1975, 0.0
    %v1985 = vmax.f32 %v1805, 0.0
    %v1986 = vmax.f32 %v1807, 0.0
    %v1987 = vmax.f32 %v1977, 0.0
    %v1988 = vmax.f32 %v1979, 0.0
    %v1989 = vpack.c.bf16 %v1985, %v1981
    %v1990 = vpack.c.bf16 %v1986, %v1982
    %v1991 = vpack.c.bf16 %v1987, %v1983
    %v1992 = vpack.c.bf16 %v1988, %v1984
    %v1993 = vld [vmem:[#allocation4] sm:$0xff]
    %v1994 = vld [vmem:[#allocation4 + $0x8] sm:$0xff]
    %v1995 = vld [vmem:[#allocation4 + $0x10] sm:$0xff]
    %v1996 = vld [vmem:[#allocation4 + $0x18] sm:$0xff]
    %v1997 = vld [vmem:[#allocation4 + $0x20] sm:$0xff]
    %v1998 = vld [vmem:[#allocation4 + $0x28] sm:$0xff]
    %v1999 = vld [vmem:[#allocation4 + $0x30] sm:$0xff]
    %v2000 = vld [vmem:[#allocation4 + $0x38] sm:$0xff]
    %v2001 = vld [vmem:[#allocation4 + $0x40] sm:$0xff]
    %v2002 = vld [vmem:[#allocation4 + $0x48] sm:$0xff]
    %v2003 = vld [vmem:[#allocation4 + $0x50] sm:$0xff]
    %v2004 = vld [vmem:[#allocation4 + $0x58] sm:$0xff]
    %v2005 = vld [vmem:[#allocation4 + $0x60] sm:$0xff]
    %v2006 = vld [vmem:[#allocation4 + $0x68] sm:$0xff]
    %v2007 = vld [vmem:[#allocation4 + $0x70] sm:$0xff]
    %v2008 = vld [vmem:[#allocation4 + $0x78] sm:$0xff]
    %v2009 = vld [vmem:[#allocation4 + $0x80] sm:$0xff]
    %v2010 = vld [vmem:[#allocation4 + $0x88] sm:$0xff]
    %v2011 = vld [vmem:[#allocation4 + $0x90] sm:$0xff]
    %v2012 = vld [vmem:[#allocation4 + $0x98] sm:$0xff]
    %v2013 = vld [vmem:[#allocation4 + $0xa0] sm:$0xff]
    %v2014 = vld [vmem:[#allocation4 + $0xa8] sm:$0xff]
    %v2015 = vld [vmem:[#allocation4 + $0xb0] sm:$0xff]
    %v2016 = vld [vmem:[#allocation4 + $0xb8] sm:$0xff]
    %v2017 = vld [vmem:[#allocation4 + $0xc0] sm:$0xff]
    %v2018 = vld [vmem:[#allocation4 + $0xc8] sm:$0xff]
    %v2019 = vld [vmem:[#allocation4 + $0xd0] sm:$0xff]
    %v2020 = vld [vmem:[#allocation4 + $0xd8] sm:$0xff]
    %v2021 = vld [vmem:[#allocation4 + $0xe0] sm:$0xff]
    %v2022 = vld [vmem:[#allocation4 + $0xe8] sm:$0xff]
    %v2023 = vld [vmem:[#allocation4 + $0xf0] sm:$0xff]
    %v2024 = vld [vmem:[#allocation4 + $0xf8] sm:$0xff]
    %v2025 = vld [vmem:[#allocation4 + $0x100] sm:$0xff]
    %v2026 = vld [vmem:[#allocation4 + $0x108] sm:$0xff]
    %v2027 = vld [vmem:[#allocation4 + $0x110] sm:$0xff]
    %v2028 = vld [vmem:[#allocation4 + $0x118] sm:$0xff]
    %v2029 = vld [vmem:[#allocation4 + $0x120] sm:$0xff]
    %v2030 = vld [vmem:[#allocation4 + $0x128] sm:$0xff]
    %v2031 = vld [vmem:[#allocation4 + $0x130] sm:$0xff]
    %v2032 = vld [vmem:[#allocation4 + $0x138] sm:$0xff]
    %v2033 = vld [vmem:[#allocation4 + $0x140] sm:$0xff]
    %v2034 = vld [vmem:[#allocation4 + $0x148] sm:$0xff]
    %v2035 = vld [vmem:[#allocation4 + $0x150] sm:$0xff]
    %v2036 = vld [vmem:[#allocation4 + $0x158] sm:$0xff]
    %v2037 = vld [vmem:[#allocation4 + $0x160] sm:$0xff]
    %v2038 = vld [vmem:[#allocation4 + $0x168] sm:$0xff]
    %v2039 = vld [vmem:[#allocation4 + $0x170] sm:$0xff]
    %v2040 = vld [vmem:[#allocation4 + $0x178] sm:$0xff]
    %v2041 = vld [vmem:[#allocation4 + $0x180] sm:$0xff]
    %v2042 = vld [vmem:[#allocation4 + $0x188] sm:$0xff]
    %v2043 = vld [vmem:[#allocation4 + $0x190] sm:$0xff]
    %v2044 = vld [vmem:[#allocation4 + $0x198] sm:$0xff]
    %v2045 = vld [vmem:[#allocation4 + $0x1a0] sm:$0xff]
    %v2046 = vld [vmem:[#allocation4 + $0x1a8] sm:$0xff]
    %v2047 = vld [vmem:[#allocation4 + $0x1b0] sm:$0xff]
    %v2048 = vld [vmem:[#allocation4 + $0x1b8] sm:$0xff]
    %v2049 = vld [vmem:[#allocation4 + $0x1c0] sm:$0xff]
    %v2050 = vld [vmem:[#allocation4 + $0x1c8] sm:$0xff]
    %v2051 = vld [vmem:[#allocation4 + $0x1d0] sm:$0xff]
    %v2052 = vld [vmem:[#allocation4 + $0x1d8] sm:$0xff]
    %v2053 = vld [vmem:[#allocation4 + $0x1e0] sm:$0xff]
    %v2054 = vld [vmem:[#allocation4 + $0x1e8] sm:$0xff]
    %v2055 = vld [vmem:[#allocation4 + $0x1f0] sm:$0xff]
    %v2056 = vld [vmem:[#allocation4 + $0x1f8] sm:$0xff]
    %v2057 = vld [vmem:[#allocation4 + $0x200] sm:$0xff]
    %v2058 = vld [vmem:[#allocation4 + $0x208] sm:$0xff]
    %v2059 = vld [vmem:[#allocation4 + $0x210] sm:$0xff]
    %v2060 = vld [vmem:[#allocation4 + $0x218] sm:$0xff]
    %v2061 = vld [vmem:[#allocation4 + $0x220] sm:$0xff]
    %v2062 = vld [vmem:[#allocation4 + $0x228] sm:$0xff]
    %v2063 = vld [vmem:[#allocation4 + $0x230] sm:$0xff]
    %v2064 = vld [vmem:[#allocation4 + $0x238] sm:$0xff]
    %v2065 = vld [vmem:[#allocation4 + $0x240] sm:$0xff]
    %v2066 = vld [vmem:[#allocation4 + $0x248] sm:$0xff]
    %v2067 = vld [vmem:[#allocation4 + $0x250] sm:$0xff]
    %v2068 = vld [vmem:[#allocation4 + $0x258] sm:$0xff]
    %v2069 = vld [vmem:[#allocation4 + $0x260] sm:$0xff]
    %v2070 = vld [vmem:[#allocation4 + $0x268] sm:$0xff]
    %v2071 = vld [vmem:[#allocation4 + $0x270] sm:$0xff]
    %v2072 = vld [vmem:[#allocation4 + $0x278] sm:$0xff]
    %v2073 = vld [vmem:[#allocation4 + $0x280] sm:$0xff]
    %v2074 = vld [vmem:[#allocation4 + $0x288] sm:$0xff]
    %v2075 = vld [vmem:[#allocation4 + $0x290] sm:$0xff]
    %v2076 = vld [vmem:[#allocation4 + $0x298] sm:$0xff]
    %v2077 = vld [vmem:[#allocation4 + $0x2a0] sm:$0xff]
    %v2078 = vld [vmem:[#allocation4 + $0x2a8] sm:$0xff]
    %v2079 = vld [vmem:[#allocation4 + $0x2b0] sm:$0xff]
    %v2080 = vld [vmem:[#allocation4 + $0x2b8] sm:$0xff]
    %v2081 = vld [vmem:[#allocation4 + $0x2c0] sm:$0xff]
    %v2082 = vld [vmem:[#allocation4 + $0x2c8] sm:$0xff]
    %v2083 = vld [vmem:[#allocation4 + $0x2d0] sm:$0xff]
    %v2084 = vld [vmem:[#allocation4 + $0x2d8] sm:$0xff]
    %v2085 = vld [vmem:[#allocation4 + $0x2e0] sm:$0xff]
    %v2086 = vld [vmem:[#allocation4 + $0x2e8] sm:$0xff]
    %v2087 = vld [vmem:[#allocation4 + $0x2f0] sm:$0xff]
    %v2088 = vld [vmem:[#allocation4 + $0x2f8] sm:$0xff]
    %v2089 = vld [vmem:[#allocation4 + $0x300] sm:$0xff]
    %v2090 = vld [vmem:[#allocation4 + $0x308] sm:$0xff]
    %v2091 = vld [vmem:[#allocation4 + $0x310] sm:$0xff]
    %v2092 = vld [vmem:[#allocation4 + $0x318] sm:$0xff]
    %v2093 = vld [vmem:[#allocation4 + $0x320] sm:$0xff]
    %v2094 = vld [vmem:[#allocation4 + $0x328] sm:$0xff]
    %v2095 = vld [vmem:[#allocation4 + $0x330] sm:$0xff]
    %v2096 = vld [vmem:[#allocation4 + $0x338] sm:$0xff]
    %v2097 = vld [vmem:[#allocation4 + $0x340] sm:$0xff]
    %v2098 = vld [vmem:[#allocation4 + $0x348] sm:$0xff]
    %v2099 = vld [vmem:[#allocation4 + $0x350] sm:$0xff]
    %v2100 = vld [vmem:[#allocation4 + $0x358] sm:$0xff]
    %v2101 = vld [vmem:[#allocation4 + $0x360] sm:$0xff]
    %v2102 = vld [vmem:[#allocation4 + $0x368] sm:$0xff]
    %v2103 = vld [vmem:[#allocation4 + $0x370] sm:$0xff]
    %v2104 = vld [vmem:[#allocation4 + $0x378] sm:$0xff]
    %v2105 = vld [vmem:[#allocation4 + $0x380] sm:$0xff]
    %v2106 = vld [vmem:[#allocation4 + $0x388] sm:$0xff]
    %v2107 = vld [vmem:[#allocation4 + $0x390] sm:$0xff]
    %v2108 = vld [vmem:[#allocation4 + $0x398] sm:$0xff]
    %v2109 = vld [vmem:[#allocation4 + $0x3a0] sm:$0xff]
    %v2110 = vld [vmem:[#allocation4 + $0x3a8] sm:$0xff]
    %v2111 = vld [vmem:[#allocation4 + $0x3b0] sm:$0xff]
    %v2112 = vld [vmem:[#allocation4 + $0x3b8] sm:$0xff]
    %v2113 = vld [vmem:[#allocation4 + $0x3c0] sm:$0xff]
    %v2114 = vld [vmem:[#allocation4 + $0x3c8] sm:$0xff]
    %v2115 = vld [vmem:[#allocation4 + $0x3d0] sm:$0xff]
    %v2116 = vld [vmem:[#allocation4 + $0x3d8] sm:$0xff]
    %v2117 = vld [vmem:[#allocation4 + $0x3e0] sm:$0xff]
    %v2118 = vld [vmem:[#allocation4 + $0x3e8] sm:$0xff]
    %v2119 = vld [vmem:[#allocation4 + $0x3f0] sm:$0xff]
    %v2120 = vld [vmem:[#allocation4 + $0x3f8] sm:$0xff]
    %v2121 = vld [vmem:[%s4] sm:$0xf]
    %v2123 = vlaneseq
    %v2124 = vshrl.u32 %v2123, 7
    %v2125 = vsub.s32 0, %v2124
    %v2126 = vrot.slane %v2121, %v2125
    %v2127 = vlaneseq
    %v2128 = vshrl.u32 %v2127, 7
    %v2129 = vsub.s32 1, %v2128
    %v2130 = vrot.slane %v2121, %v2129
    %v2131 = vlaneseq
    %v2132 = vshrl.u32 %v2131, 7
    %v2133 = vsub.s32 2, %v2132
    %v2134 = vrot.slane %v2121, %v2133
    %v2135 = vlaneseq
    %v2136 = vshrl.u32 %v2135, 7
    %v2137 = vsub.s32 3, %v2136
    %v2138 = vrot.slane %v2121, %v2137
    %v2271 = vunpack.c.l.b16 %v1993
    %v2272 = vunpack.c.h.b16 %v1993
    %v2273 = vunpack.c.l.b16 %v1994
    %v2274 = vunpack.c.h.b16 %v1994
    %v2275 = vunpack.c.l.b16 %v1995
    %v2276 = vunpack.c.h.b16 %v1995
    %v2277 = vunpack.c.l.b16 %v1996
    %v2278 = vunpack.c.h.b16 %v1996
    %v2279 = vunpack.c.l.b16 %v1997
    %v2280 = vunpack.c.h.b16 %v1997
    %v2281 = vunpack.c.l.b16 %v1998
    %v2282 = vunpack.c.h.b16 %v1998
    %v2283 = vunpack.c.l.b16 %v1999
    %v2284 = vunpack.c.h.b16 %v1999
    %v2285 = vunpack.c.l.b16 %v2000
    %v2286 = vunpack.c.h.b16 %v2000
    %v2287 = vunpack.c.l.b16 %v2001
    %v2288 = vunpack.c.h.b16 %v2001
    %v2289 = vunpack.c.l.b16 %v2002
    %v2290 = vunpack.c.h.b16 %v2002
    %v2291 = vunpack.c.l.b16 %v2003
    %v2292 = vunpack.c.h.b16 %v2003
    %v2293 = vunpack.c.l.b16 %v2004
    %v2294 = vunpack.c.h.b16 %v2004
    %v2295 = vunpack.c.l.b16 %v2005
    %v2296 = vunpack.c.h.b16 %v2005
    %v2297 = vunpack.c.l.b16 %v2006
    %v2298 = vunpack.c.h.b16 %v2006
    %v2299 = vunpack.c.l.b16 %v2007
    %v2300 = vunpack.c.h.b16 %v2007
    %v2301 = vunpack.c.l.b16 %v2008
    %v2302 = vunpack.c.h.b16 %v2008
    %v2303 = vunpack.c.l.b16 %v2009
    %v2304 = vunpack.c.h.b16 %v2009
    %v2305 = vunpack.c.l.b16 %v2010
    %v2306 = vunpack.c.h.b16 %v2010
    %v2307 = vunpack.c.l.b16 %v2011
    %v2308 = vunpack.c.h.b16 %v2011
    %v2309 = vunpack.c.l.b16 %v2012
    %v2310 = vunpack.c.h.b16 %v2012
    %v2311 = vunpack.c.l.b16 %v2013
    %v2312 = vunpack.c.h.b16 %v2013
    %v2313 = vunpack.c.l.b16 %v2014
    %v2314 = vunpack.c.h.b16 %v2014
    %v2315 = vunpack.c.l.b16 %v2015
    %v2316 = vunpack.c.h.b16 %v2015
    %v2317 = vunpack.c.l.b16 %v2016
    %v2318 = vunpack.c.h.b16 %v2016
    %v2319 = vunpack.c.l.b16 %v2017
    %v2320 = vunpack.c.h.b16 %v2017
    %v2321 = vunpack.c.l.b16 %v2018
    %v2322 = vunpack.c.h.b16 %v2018
    %v2323 = vunpack.c.l.b16 %v2019
    %v2324 = vunpack.c.h.b16 %v2019
    %v2325 = vunpack.c.l.b16 %v2020
    %v2326 = vunpack.c.h.b16 %v2020
    %v2327 = vunpack.c.l.b16 %v2021
    %v2328 = vunpack.c.h.b16 %v2021
    %v2329 = vunpack.c.l.b16 %v2022
    %v2330 = vunpack.c.h.b16 %v2022
    %v2331 = vunpack.c.l.b16 %v2023
    %v2332 = vunpack.c.h.b16 %v2023
    %v2333 = vunpack.c.l.b16 %v2024
    %v2334 = vunpack.c.h.b16 %v2024
    %v2335 = vunpack.c.l.b16 %v2025
    %v2336 = vunpack.c.h.b16 %v2025
    %v2337 = vunpack.c.l.b16 %v2026
    %v2338 = vunpack.c.h.b16 %v2026
    %v2339 = vunpack.c.l.b16 %v2027
    %v2340 = vunpack.c.h.b16 %v2027
    %v2341 = vunpack.c.l.b16 %v2028
    %v2342 = vunpack.c.h.b16 %v2028
    %v2343 = vunpack.c.l.b16 %v2029
    %v2344 = vunpack.c.h.b16 %v2029
    %v2345 = vunpack.c.l.b16 %v2030
    %v2346 = vunpack.c.h.b16 %v2030
    %v2347 = vunpack.c.l.b16 %v2031
    %v2348 = vunpack.c.h.b16 %v2031
    %v2349 = vunpack.c.l.b16 %v2032
    %v2350 = vunpack.c.h.b16 %v2032
    %v2351 = vunpack.c.l.b16 %v2033
    %v2352 = vunpack.c.h.b16 %v2033
    %v2353 = vunpack.c.l.b16 %v2034
    %v2354 = vunpack.c.h.b16 %v2034
    %v2355 = vunpack.c.l.b16 %v2035
    %v2356 = vunpack.c.h.b16 %v2035
    %v2357 = vunpack.c.l.b16 %v2036
    %v2358 = vunpack.c.h.b16 %v2036
    %v2359 = vunpack.c.l.b16 %v2037
    %v2360 = vunpack.c.h.b16 %v2037
    %v2361 = vunpack.c.l.b16 %v2038
    %v2362 = vunpack.c.h.b16 %v2038
    %v2363 = vunpack.c.l.b16 %v2039
    %v2364 = vunpack.c.h.b16 %v2039
    %v2365 = vunpack.c.l.b16 %v2040
    %v2366 = vunpack.c.h.b16 %v2040
    %v2367 = vunpack.c.l.b16 %v2041
    %v2368 = vunpack.c.h.b16 %v2041
    %v2369 = vunpack.c.l.b16 %v2042
    %v2370 = vunpack.c.h.b16 %v2042
    %v2371 = vunpack.c.l.b16 %v2043
    %v2372 = vunpack.c.h.b16 %v2043
    %v2373 = vunpack.c.l.b16 %v2044
    %v2374 = vunpack.c.h.b16 %v2044
    %v2375 = vunpack.c.l.b16 %v2045
    %v2376 = vunpack.c.h.b16 %v2045
    %v2377 = vunpack.c.l.b16 %v2046
    %v2378 = vunpack.c.h.b16 %v2046
    %v2379 = vunpack.c.l.b16 %v2047
    %v2380 = vunpack.c.h.b16 %v2047
    %v2381 = vunpack.c.l.b16 %v2048
    %v2382 = vunpack.c.h.b16 %v2048
    %v2383 = vunpack.c.l.b16 %v2049
    %v2384 = vunpack.c.h.b16 %v2049
    %v2385 = vunpack.c.l.b16 %v2050
    %v2386 = vunpack.c.h.b16 %v2050
    %v2387 = vunpack.c.l.b16 %v2051
    %v2388 = vunpack.c.h.b16 %v2051
    %v2389 = vunpack.c.l.b16 %v2052
    %v2390 = vunpack.c.h.b16 %v2052
    %v2391 = vunpack.c.l.b16 %v2053
    %v2392 = vunpack.c.h.b16 %v2053
    %v2393 = vunpack.c.l.b16 %v2054
    %v2394 = vunpack.c.h.b16 %v2054
    %v2395 = vunpack.c.l.b16 %v2055
    %v2396 = vunpack.c.h.b16 %v2055
    %v2397 = vunpack.c.l.b16 %v2056
    %v2398 = vunpack.c.h.b16 %v2056
    %v2399 = vunpack.c.l.b16 %v2057
    %v2400 = vunpack.c.h.b16 %v2057
    %v2401 = vunpack.c.l.b16 %v2058
    %v2402 = vunpack.c.h.b16 %v2058
    %v2403 = vunpack.c.l.b16 %v2059
    %v2404 = vunpack.c.h.b16 %v2059
    %v2405 = vunpack.c.l.b16 %v2060
    %v2406 = vunpack.c.h.b16 %v2060
    %v2407 = vunpack.c.l.b16 %v2061
    %v2408 = vunpack.c.h.b16 %v2061
    %v2409 = vunpack.c.l.b16 %v2062
    %v2410 = vunpack.c.h.b16 %v2062
    %v2411 = vunpack.c.l.b16 %v2063
    %v2412 = vunpack.c.h.b16 %v2063
    %v2413 = vunpack.c.l.b16 %v2064
    %v2414 = vunpack.c.h.b16 %v2064
    %v2415 = vunpack.c.l.b16 %v2065
    %v2416 = vunpack.c.h.b16 %v2065
    %v2417 = vunpack.c.l.b16 %v2066
    %v2418 = vunpack.c.h.b16 %v2066
    %v2419 = vunpack.c.l.b16 %v2067
    %v2420 = vunpack.c.h.b16 %v2067
    %v2421 = vunpack.c.l.b16 %v2068
    %v2422 = vunpack.c.h.b16 %v2068
    %v2423 = vunpack.c.l.b16 %v2069
    %v2424 = vunpack.c.h.b16 %v2069
    %v2425 = vunpack.c.l.b16 %v2070
    %v2426 = vunpack.c.h.b16 %v2070
    %v2427 = vunpack.c.l.b16 %v2071
    %v2428 = vunpack.c.h.b16 %v2071
    %v2429 = vunpack.c.l.b16 %v2072
    %v2430 = vunpack.c.h.b16 %v2072
    %v2431 = vunpack.c.l.b16 %v2073
    %v2432 = vunpack.c.h.b16 %v2073
    %v2433 = vunpack.c.l.b16 %v2074
    %v2434 = vunpack.c.h.b16 %v2074
    %v2435 = vunpack.c.l.b16 %v2075
    %v2436 = vunpack.c.h.b16 %v2075
    %v2437 = vunpack.c.l.b16 %v2076
    %v2438 = vunpack.c.h.b16 %v2076
    %v2439 = vunpack.c.l.b16 %v2077
    %v2440 = vunpack.c.h.b16 %v2077
    %v2441 = vunpack.c.l.b16 %v2078
    %v2442 = vunpack.c.h.b16 %v2078
    %v2443 = vunpack.c.l.b16 %v2079
    %v2444 = vunpack.c.h.b16 %v2079
    %v2445 = vunpack.c.l.b16 %v2080
    %v2446 = vunpack.c.h.b16 %v2080
    %v2447 = vunpack.c.l.b16 %v2081
    %v2448 = vunpack.c.h.b16 %v2081
    %v2449 = vunpack.c.l.b16 %v2082
    %v2450 = vunpack.c.h.b16 %v2082
    %v2451 = vunpack.c.l.b16 %v2083
    %v2452 = vunpack.c.h.b16 %v2083
    %v2453 = vunpack.c.l.b16 %v2084
    %v2454 = vunpack.c.h.b16 %v2084
    %v2455 = vunpack.c.l.b16 %v2085
    %v2456 = vunpack.c.h.b16 %v2085
    %v2457 = vunpack.c.l.b16 %v2086
    %v2458 = vunpack.c.h.b16 %v2086
    %v2459 = vunpack.c.l.b16 %v2087
    %v2460 = vunpack.c.h.b16 %v2087
    %v2461 = vunpack.c.l.b16 %v2088
    %v2462 = vunpack.c.h.b16 %v2088
    %v2463 = vunpack.c.l.b16 %v2089
    %v2464 = vunpack.c.h.b16 %v2089
    %v2465 = vunpack.c.l.b16 %v2090
    %v2466 = vunpack.c.h.b16 %v2090
    %v2467 = vunpack.c.l.b16 %v2091
    %v2468 = vunpack.c.h.b16 %v2091
    %v2469 = vunpack.c.l.b16 %v2092
    %v2470 = vunpack.c.h.b16 %v2092
    %v2471 = vunpack.c.l.b16 %v2093
    %v2472 = vunpack.c.h.b16 %v2093
    %v2473 = vunpack.c.l.b16 %v2094
    %v2474 = vunpack.c.h.b16 %v2094
    %v2475 = vunpack.c.l.b16 %v2095
    %v2476 = vunpack.c.h.b16 %v2095
    %v2477 = vunpack.c.l.b16 %v2096
    %v2478 = vunpack.c.h.b16 %v2096
    %v2479 = vunpack.c.l.b16 %v2097
    %v2480 = vunpack.c.h.b16 %v2097
    %v2481 = vunpack.c.l.b16 %v2098
    %v2482 = vunpack.c.h.b16 %v2098
    %v2483 = vunpack.c.l.b16 %v2099
    %v2484 = vunpack.c.h.b16 %v2099
    %v2485 = vunpack.c.l.b16 %v2100
    %v2486 = vunpack.c.h.b16 %v2100
    %v2487 = vunpack.c.l.b16 %v2101
    %v2488 = vunpack.c.h.b16 %v2101
    %v2489 = vunpack.c.l.b16 %v2102
    %v2490 = vunpack.c.h.b16 %v2102
    %v2491 = vunpack.c.l.b16 %v2103
    %v2492 = vunpack.c.h.b16 %v2103
    %v2493 = vunpack.c.l.b16 %v2104
    %v2494 = vunpack.c.h.b16 %v2104
    %v2495 = vunpack.c.l.b16 %v2105
    %v2496 = vunpack.c.h.b16 %v2105
    %v2497 = vunpack.c.l.b16 %v2106
    %v2498 = vunpack.c.h.b16 %v2106
    %v2499 = vunpack.c.l.b16 %v2107
    %v2500 = vunpack.c.h.b16 %v2107
    %v2501 = vunpack.c.l.b16 %v2108
    %v2502 = vunpack.c.h.b16 %v2108
    %v2503 = vunpack.c.l.b16 %v2109
    %v2504 = vunpack.c.h.b16 %v2109
    %v2505 = vunpack.c.l.b16 %v2110
    %v2506 = vunpack.c.h.b16 %v2110
    %v2507 = vunpack.c.l.b16 %v2111
    %v2508 = vunpack.c.h.b16 %v2111
    %v2509 = vunpack.c.l.b16 %v2112
    %v2510 = vunpack.c.h.b16 %v2112
    %v2511 = vunpack.c.l.b16 %v2113
    %v2512 = vunpack.c.h.b16 %v2113
    %v2513 = vunpack.c.l.b16 %v2114
    %v2514 = vunpack.c.h.b16 %v2114
    %v2515 = vunpack.c.l.b16 %v2115
    %v2516 = vunpack.c.h.b16 %v2115
    %v2517 = vunpack.c.l.b16 %v2116
    %v2518 = vunpack.c.h.b16 %v2116
    %v2519 = vunpack.c.l.b16 %v2117
    %v2520 = vunpack.c.h.b16 %v2117
    %v2521 = vunpack.c.l.b16 %v2118
    %v2522 = vunpack.c.h.b16 %v2118
    %v2523 = vunpack.c.l.b16 %v2119
    %v2524 = vunpack.c.h.b16 %v2119
    %v2525 = vunpack.c.l.b16 %v2120
    %v2526 = vunpack.c.h.b16 %v2120
    %v2527 = vpack.c.b16 %v2275, %v2271
    %v2528 = vpack.c.b16 %v2276, %v2272
    %v2529 = vpack.c.b16 %v2277, %v2273
    %v2530 = vpack.c.b16 %v2278, %v2274
    %v2531 = vpack.c.b16 %v2283, %v2279
    %v2532 = vpack.c.b16 %v2284, %v2280
    %v2533 = vpack.c.b16 %v2285, %v2281
    %v2534 = vpack.c.b16 %v2286, %v2282
    %v2535 = vpack.c.b16 %v2291, %v2287
    %v2536 = vpack.c.b16 %v2292, %v2288
    %v2537 = vpack.c.b16 %v2293, %v2289
    %v2538 = vpack.c.b16 %v2294, %v2290
    %v2539 = vpack.c.b16 %v2299, %v2295
    %v2540 = vpack.c.b16 %v2300, %v2296
    %v2541 = vpack.c.b16 %v2301, %v2297
    %v2542 = vpack.c.b16 %v2302, %v2298
    %v2543 = vpack.c.b16 %v2307, %v2303
    %v2544 = vpack.c.b16 %v2308, %v2304
    %v2545 = vpack.c.b16 %v2309, %v2305
    %v2546 = vpack.c.b16 %v2310, %v2306
    %v2547 = vpack.c.b16 %v2315, %v2311
    %v2548 = vpack.c.b16 %v2316, %v2312
    %v2549 = vpack.c.b16 %v2317, %v2313
    %v2550 = vpack.c.b16 %v2318, %v2314
    %v2551 = vpack.c.b16 %v2323, %v2319
    %v2552 = vpack.c.b16 %v2324, %v2320
    %v2553 = vpack.c.b16 %v2325, %v2321
    %v2554 = vpack.c.b16 %v2326, %v2322
    %v2555 = vpack.c.b16 %v2331, %v2327
    %v2556 = vpack.c.b16 %v2332, %v2328
    %v2557 = vpack.c.b16 %v2333, %v2329
    %v2558 = vpack.c.b16 %v2334, %v2330
    %v2559 = vpack.c.b16 %v2339, %v2335
    %v2560 = vpack.c.b16 %v2340, %v2336
    %v2561 = vpack.c.b16 %v2341, %v2337
    %v2562 = vpack.c.b16 %v2342, %v2338
    %v2563 = vpack.c.b16 %v2347, %v2343
    %v2564 = vpack.c.b16 %v2348, %v2344
    %v2565 = vpack.c.b16 %v2349, %v2345
    %v2566 = vpack.c.b16 %v2350, %v2346
    %v2567 = vpack.c.b16 %v2355, %v2351
    %v2568 = vpack.c.b16 %v2356, %v2352
    %v2569 = vpack.c.b16 %v2357, %v2353
    %v2570 = vpack.c.b16 %v2358, %v2354
    %v2571 = vpack.c.b16 %v2363, %v2359
    %v2572 = vpack.c.b16 %v2364, %v2360
    %v2573 = vpack.c.b16 %v2365, %v2361
    %v2574 = vpack.c.b16 %v2366, %v2362
    %v2575 = vpack.c.b16 %v2371, %v2367
    %v2576 = vpack.c.b16 %v2372, %v2368
    %v2577 = vpack.c.b16 %v2373, %v2369
    %v2578 = vpack.c.b16 %v2374, %v2370
    %v2579 = vpack.c.b16 %v2379, %v2375
    %v2580 = vpack.c.b16 %v2380, %v2376
    %v2581 = vpack.c.b16 %v2381, %v2377
    %v2582 = vpack.c.b16 %v2382, %v2378
    %v2583 = vpack.c.b16 %v2387, %v2383
    %v2584 = vpack.c.b16 %v2388, %v2384
    %v2585 = vpack.c.b16 %v2389, %v2385
    %v2586 = vpack.c.b16 %v2390, %v2386
    %v2587 = vpack.c.b16 %v2395, %v2391
    %v2588 = vpack.c.b16 %v2396, %v2392
    %v2589 = vpack.c.b16 %v2397, %v2393
    %v2590 = vpack.c.b16 %v2398, %v2394
    %v2591 = vpack.c.b16 %v2403, %v2399
    %v2592 = vpack.c.b16 %v2404, %v2400
    %v2593 = vpack.c.b16 %v2405, %v2401
    %v2594 = vpack.c.b16 %v2406, %v2402
    %v2595 = vpack.c.b16 %v2411, %v2407
    %v2596 = vpack.c.b16 %v2412, %v2408
    %v2597 = vpack.c.b16 %v2413, %v2409
    %v2598 = vpack.c.b16 %v2414, %v2410
    %v2599 = vpack.c.b16 %v2419, %v2415
    %v2600 = vpack.c.b16 %v2420, %v2416
    %v2601 = vpack.c.b16 %v2421, %v2417
    %v2602 = vpack.c.b16 %v2422, %v2418
    %v2603 = vpack.c.b16 %v2427, %v2423
    %v2604 = vpack.c.b16 %v2428, %v2424
    %v2605 = vpack.c.b16 %v2429, %v2425
    %v2606 = vpack.c.b16 %v2430, %v2426
    %v2607 = vpack.c.b16 %v2435, %v2431
    %v2608 = vpack.c.b16 %v2436, %v2432
    %v2609 = vpack.c.b16 %v2437, %v2433
    %v2610 = vpack.c.b16 %v2438, %v2434
    %v2611 = vpack.c.b16 %v2443, %v2439
    %v2612 = vpack.c.b16 %v2444, %v2440
    %v2613 = vpack.c.b16 %v2445, %v2441
    %v2614 = vpack.c.b16 %v2446, %v2442
    %v2615 = vpack.c.b16 %v2451, %v2447
    %v2616 = vpack.c.b16 %v2452, %v2448
    %v2617 = vpack.c.b16 %v2453, %v2449
    %v2618 = vpack.c.b16 %v2454, %v2450
    %v2619 = vpack.c.b16 %v2459, %v2455
    %v2620 = vpack.c.b16 %v2460, %v2456
    %v2621 = vpack.c.b16 %v2461, %v2457
    %v2622 = vpack.c.b16 %v2462, %v2458
    %v2623 = vpack.c.b16 %v2467, %v2463
    %v2624 = vpack.c.b16 %v2468, %v2464
    %v2625 = vpack.c.b16 %v2469, %v2465
    %v2626 = vpack.c.b16 %v2470, %v2466
    %v2627 = vpack.c.b16 %v2475, %v2471
    %v2628 = vpack.c.b16 %v2476, %v2472
    %v2629 = vpack.c.b16 %v2477, %v2473
    %v2630 = vpack.c.b16 %v2478, %v2474
    %v2631 = vpack.c.b16 %v2483, %v2479
    %v2632 = vpack.c.b16 %v2484, %v2480
    %v2633 = vpack.c.b16 %v2485, %v2481
    %v2634 = vpack.c.b16 %v2486, %v2482
    %v2635 = vpack.c.b16 %v2491, %v2487
    %v2636 = vpack.c.b16 %v2492, %v2488
    %v2637 = vpack.c.b16 %v2493, %v2489
    %v2638 = vpack.c.b16 %v2494, %v2490
    %v2639 = vpack.c.b16 %v2499, %v2495
    %v2640 = vpack.c.b16 %v2500, %v2496
    %v2641 = vpack.c.b16 %v2501, %v2497
    %v2642 = vpack.c.b16 %v2502, %v2498
    %v2643 = vpack.c.b16 %v2507, %v2503
    %v2644 = vpack.c.b16 %v2508, %v2504
    %v2645 = vpack.c.b16 %v2509, %v2505
    %v2646 = vpack.c.b16 %v2510, %v2506
    %v2647 = vpack.c.b16 %v2515, %v2511
    %v2648 = vpack.c.b16 %v2516, %v2512
    %v2649 = vpack.c.b16 %v2517, %v2513
    %v2650 = vpack.c.b16 %v2518, %v2514
    %v2651 = vpack.c.b16 %v2523, %v2519
    %v2652 = vpack.c.b16 %v2524, %v2520
    %v2653 = vpack.c.b16 %v2525, %v2521
    %v2654 = vpack.c.b16 %v2526, %v2522
    %2783 = vmatprep.subr.bf16.mxu0 %v2528
    %2784 = vmatpush1.bf16.msra.mxu0 %v2527
    %2785 = vmatprep.subr.bf16.mxu0 %v2532
    %2786 = vmatpush1.bf16.msra.mxu0 %v2531
    %2787 = vmatprep.subr.bf16.mxu0 %v2536
    %2788 = vmatpush1.bf16.msra.mxu0 %v2535
    %2789 = vmatprep.subr.bf16.mxu0 %v2540
    %2790 = vmatpush1.bf16.msra.mxu0 %v2539
    %2791 = vmatprep.subr.bf16.mxu0 %v2544
    %2792 = vmatpush1.bf16.msra.mxu0 %v2543
    %2793 = vmatprep.subr.bf16.mxu0 %v2548
    %2794 = vmatpush1.bf16.msra.mxu0 %v2547
    %2795 = vmatprep.subr.bf16.mxu0 %v2552
    %2796 = vmatpush1.bf16.msra.mxu0 %v2551
    %2797 = vmatprep.subr.bf16.mxu0 %v2556
    %2798 = vmatpush1.bf16.msra.mxu0 %v2555
    %2799 = vmatprep.subr.bf16.mxu0 %v2560
    %2800 = vmatpush1.bf16.msra.mxu0 %v2559
    %2801 = vmatprep.subr.bf16.mxu0 %v2564
    %2802 = vmatpush1.bf16.msra.mxu0 %v2563
    %2803 = vmatprep.subr.bf16.mxu0 %v2568
    %2804 = vmatpush1.bf16.msra.mxu0 %v2567
    %2805 = vmatprep.subr.bf16.mxu0 %v2572
    %2806 = vmatpush1.bf16.msra.mxu0 %v2571
    %2807 = vmatprep.subr.bf16.mxu0 %v2576
    %2808 = vmatpush1.bf16.msra.mxu0 %v2575
    %2809 = vmatprep.subr.bf16.mxu0 %v2580
    %2810 = vmatpush1.bf16.msra.mxu0 %v2579
    %2811 = vmatprep.subr.bf16.mxu0 %v2584
    %2812 = vmatpush1.bf16.msra.mxu0 %v2583
    %2813 = vmatprep.subr.bf16.mxu0 %v2588
    %2814 = vmatpush1.bf16.msra.mxu0 %v2587
    %2815 = vmatprep.mubr.bf16.mxu0 %v1990
    %2816 = vmatmul.mubr.bf16.gmra.mrb[0].mxu0 %v1989
    %v2817 = vpop.f32.mrb[0].mxu0
    %v2818 = vadd.f32 %v2126, %v2817
    %v2819 = vpop.f32.mrb[0].mxu0
    %v2820 = vadd.f32 %v2130, %v2819
    %v2821 = vpop.f32.mrb[0].mxu0
    %v2822 = vadd.f32 %v2126, %v2821
    %v2823 = vpop.f32.mrb[0].mxu0
    %v2824 = vadd.f32 %v2130, %v2823
    %2825 = vdwg.mxu0
    %2826 = vmatprep.subr.bf16.mxu0 %v2592
    %2827 = vmatpush1.bf16.msra.mxu0 %v2591
    %2828 = vmatprep.subr.bf16.mxu0 %v2596
    %2829 = vmatpush1.bf16.msra.mxu0 %v2595
    %2830 = vmatprep.subr.bf16.mxu0 %v2600
    %2831 = vmatpush1.bf16.msra.mxu0 %v2599
    %2832 = vmatprep.subr.bf16.mxu0 %v2604
    %2833 = vmatpush1.bf16.msra.mxu0 %v2603
    %2834 = vmatprep.subr.bf16.mxu0 %v2608
    %2835 = vmatpush1.bf16.msra.mxu0 %v2607
    %2836 = vmatprep.subr.bf16.mxu0 %v2612
    %2837 = vmatpush1.bf16.msra.mxu0 %v2611
    %2838 = vmatprep.subr.bf16.mxu0 %v2616
    %2839 = vmatpush1.bf16.msra.mxu0 %v2615
    %2840 = vmatprep.subr.bf16.mxu0 %v2620
    %2841 = vmatpush1.bf16.msra.mxu0 %v2619
    %2842 = vmatprep.subr.bf16.mxu0 %v2624
    %2843 = vmatpush1.bf16.msra.mxu0 %v2623
    %2844 = vmatprep.subr.bf16.mxu0 %v2628
    %2845 = vmatpush1.bf16.msra.mxu0 %v2627
    %2846 = vmatprep.subr.bf16.mxu0 %v2632
    %2847 = vmatpush1.bf16.msra.mxu0 %v2631
    %2848 = vmatprep.subr.bf16.mxu0 %v2636
    %2849 = vmatpush1.bf16.msra.mxu0 %v2635
    %2850 = vmatprep.subr.bf16.mxu0 %v2640
    %2851 = vmatpush1.bf16.msra.mxu0 %v2639
    %2852 = vmatprep.subr.bf16.mxu0 %v2644
    %2853 = vmatpush1.bf16.msra.mxu0 %v2643
    %2854 = vmatprep.subr.bf16.mxu0 %v2648
    %2855 = vmatpush1.bf16.msra.mxu0 %v2647
    %2856 = vmatprep.subr.bf16.mxu0 %v2652
    %2857 = vmatpush1.bf16.msra.mxu0 %v2651
    %2858 = vmatprep.mubr.bf16.mxu0 %v1992
    %2859 = vmatmul.mubr.bf16.gmra.mrb[0].mxu0 %v1991
    %v2860 = vpop.f32.mrb[0].mxu0
    %v2861 = vadd.f32 %v2818, %v2860
    %v2862 = vpop.f32.mrb[0].mxu0
    %v2863 = vadd.f32 %v2820, %v2862
    %v2864 = vpop.f32.mrb[0].mxu0
    %v2865 = vadd.f32 %v2822, %v2864
    %v2866 = vpop.f32.mrb[0].mxu0
    %v2867 = vadd.f32 %v2824, %v2866
    %2868 = vdwg.mxu0
    %2869 = vmatprep.subr.bf16.mxu0 %v2530
    %2870 = vmatpush1.bf16.msra.mxu0 %v2529
    %2871 = vmatprep.subr.bf16.mxu0 %v2534
    %2872 = vmatpush1.bf16.msra.mxu0 %v2533
    %2873 = vmatprep.subr.bf16.mxu0 %v2538
    %2874 = vmatpush1.bf16.msra.mxu0 %v2537
    %2875 = vmatprep.subr.bf16.mxu0 %v2542
    %2876 = vmatpush1.bf16.msra.mxu0 %v2541
    %2877 = vmatprep.subr.bf16.mxu0 %v2546
    %2878 = vmatpush1.bf16.msra.mxu0 %v2545
    %2879 = vmatprep.subr.bf16.mxu0 %v2550
    %2880 = vmatpush1.bf16.msra.mxu0 %v2549
    %2881 = vmatprep.subr.bf16.mxu0 %v2554
    %2882 = vmatpush1.bf16.msra.mxu0 %v2553
    %2883 = vmatprep.subr.bf16.mxu0 %v2558
    %2884 = vmatpush1.bf16.msra.mxu0 %v2557
    %2885 = vmatprep.subr.bf16.mxu0 %v2562
    %2886 = vmatpush1.bf16.msra.mxu0 %v2561
    %2887 = vmatprep.subr.bf16.mxu0 %v2566
    %2888 = vmatpush1.bf16.msra.mxu0 %v2565
    %2889 = vmatprep.subr.bf16.mxu0 %v2570
    %2890 = vmatpush1.bf16.msra.mxu0 %v2569
    %2891 = vmatprep.subr.bf16.mxu0 %v2574
    %2892 = vmatpush1.bf16.msra.mxu0 %v2573
    %2893 = vmatprep.subr.bf16.mxu0 %v2578
    %2894 = vmatpush1.bf16.msra.mxu0 %v2577
    %2895 = vmatprep.subr.bf16.mxu0 %v2582
    %2896 = vmatpush1.bf16.msra.mxu0 %v2581
    %2897 = vmatprep.subr.bf16.mxu0 %v2586
    %2898 = vmatpush1.bf16.msra.mxu0 %v2585
    %2899 = vmatprep.subr.bf16.mxu0 %v2590
    %2900 = vmatpush1.bf16.msra.mxu0 %v2589
    %2901 = vmatprep.mubr.bf16.mxu0 %v1990
    %2902 = vmatmul.mubr.bf16.gmra.mrb[0].mxu0 %v1989
    %v2903 = vpop.f32.mrb[0].mxu0
    %v2904 = vadd.f32 %v2134, %v2903
    %v2905 = vpop.f32.mrb[0].mxu0
    %v2906 = vadd.f32 %v2138, %v2905
    %v2907 = vpop.f32.mrb[0].mxu0
    %v2908 = vadd.f32 %v2134, %v2907
    %v2909 = vpop.f32.mrb[0].mxu0
    %v2910 = vadd.f32 %v2138, %v2909
    %2911 = vdwg.mxu0
    %2912 = vmatprep.subr.bf16.mxu0 %v2594
    %2913 = vmatpush1.bf16.msra.mxu0 %v2593
    %2914 = vmatprep.subr.bf16.mxu0 %v2598
    %2915 = vmatpush1.bf16.msra.mxu0 %v2597
    %2916 = vmatprep.subr.bf16.mxu0 %v2602
    %2917 = vmatpush1.bf16.msra.mxu0 %v2601
    %2918 = vmatprep.subr.bf16.mxu0 %v2606
    %2919 = vmatpush1.bf16.msra.mxu0 %v2605
    %2920 = vmatprep.subr.bf16.mxu0 %v2610
    %2921 = vmatpush1.bf16.msra.mxu0 %v2609
    %2922 = vmatprep.subr.bf16.mxu0 %v2614
    %2923 = vmatpush1.bf16.msra.mxu0 %v2613
    %2924 = vmatprep.subr.bf16.mxu0 %v2618
    %2925 = vmatpush1.bf16.msra.mxu0 %v2617
    %2926 = vmatprep.subr.bf16.mxu0 %v2622
    %2927 = vmatpush1.bf16.msra.mxu0 %v2621
    %2928 = vmatprep.subr.bf16.mxu0 %v2626
    %2929 = vmatpush1.bf16.msra.mxu0 %v2625
    %2930 = vmatprep.subr.bf16.mxu0 %v2630
    %2931 = vmatpush1.bf16.msra.mxu0 %v2629
    %2932 = vmatprep.subr.bf16.mxu0 %v2634
    %2933 = vmatpush1.bf16.msra.mxu0 %v2633
    %2934 = vmatprep.subr.bf16.mxu0 %v2638
    %2935 = vmatpush1.bf16.msra.mxu0 %v2637
    %2936 = vmatprep.subr.bf16.mxu0 %v2642
    %2937 = vmatpush1.bf16.msra.mxu0 %v2641
    %2938 = vmatprep.subr.bf16.mxu0 %v2646
    %2939 = vmatpush1.bf16.msra.mxu0 %v2645
    %2940 = vmatprep.subr.bf16.mxu0 %v2650
    %2941 = vmatpush1.bf16.msra.mxu0 %v2649
    %2942 = vmatprep.subr.bf16.mxu0 %v2654
    %2943 = vmatpush1.bf16.msra.mxu0 %v2653
    %2944 = vmatprep.mubr.bf16.mxu0 %v1992
    %2945 = vmatmul.mubr.bf16.gmra.mrb[0].mxu0 %v1991
    %v2946 = vpop.f32.mrb[0].mxu0
    %v2947 = vadd.f32 %v2904, %v2946
    %v2948 = vpop.f32.mrb[0].mxu0
    %v2949 = vadd.f32 %v2906, %v2948
    %v2950 = vpop.f32.mrb[0].mxu0
    %v2951 = vadd.f32 %v2908, %v2950
    %v2952 = vpop.f32.mrb[0].mxu0
    %v2953 = vadd.f32 %v2910, %v2952
    %2954 = vdwg.mxu0
    %v2955 = vmax.f32 %v2861, 0.0
    %v2956 = vmax.f32 %v2863, 0.0
    %v2957 = vmax.f32 %v2947, 0.0
    %v2958 = vmax.f32 %v2949, 0.0
    %v2959 = vmax.f32 %v2865, 0.0
    %v2960 = vmax.f32 %v2867, 0.0
    %v2961 = vmax.f32 %v2951, 0.0
    %v2962 = vmax.f32 %v2953, 0.0
    %v2963 = vpack.c.bf16 %v2959, %v2955
    %v2964 = vpack.c.bf16 %v2960, %v2956
    %v2965 = vpack.c.bf16 %v2961, %v2957
    %v2966 = vpack.c.bf16 %v2962, %v2958
    %v2967 = vld [vmem:[%s5] sm:$0xf]
    %v2968 = vld [vmem:[%s5 + $0x4] sm:$0xf]
    %v2969 = vld [vmem:[%s5 + $0x8] sm:$0xf]
    %v2970 = vld [vmem:[%s5 + $0xc] sm:$0xf]
    %v2971 = vld [vmem:[%s5 + $0x10] sm:$0xf]
    %v2972 = vld [vmem:[%s5 + $0x14] sm:$0xf]
    %v2973 = vld [vmem:[%s5 + $0x18] sm:$0xf]
    %v2974 = vld [vmem:[%s5 + $0x1c] sm:$0xf]
    %v2975 = vld [vmem:[%s5 + $0x20] sm:$0xf]
    %v2976 = vld [vmem:[%s5 + $0x24] sm:$0xf]
    %v2977 = vld [vmem:[%s5 + $0x28] sm:$0xf]
    %v2978 = vld [vmem:[%s5 + $0x2c] sm:$0xf]
    %v2979 = vld [vmem:[%s5 + $0x30] sm:$0xf]
    %v2980 = vld [vmem:[%s5 + $0x34] sm:$0xf]
    %v2981 = vld [vmem:[%s5 + $0x38] sm:$0xf]
    %v2982 = vld [vmem:[%s5 + $0x3c] sm:$0xf]
    %v2983 = vld [vmem:[%s5 + $0x40] sm:$0xf]
    %v2984 = vld [vmem:[%s5 + $0x44] sm:$0xf]
    %v2985 = vld [vmem:[%s5 + $0x48] sm:$0xf]
    %v2986 = vld [vmem:[%s5 + $0x4c] sm:$0xf]
    %v2987 = vld [vmem:[%s5 + $0x50] sm:$0xf]
    %v2988 = vld [vmem:[%s5 + $0x54] sm:$0xf]
    %v2989 = vld [vmem:[%s5 + $0x58] sm:$0xf]
    %v2990 = vld [vmem:[%s5 + $0x5c] sm:$0xf]
    %v2991 = vld [vmem:[%s5 + $0x60] sm:$0xf]
    %v2992 = vld [vmem:[%s5 + $0x64] sm:$0xf]
    %v2993 = vld [vmem:[%s5 + $0x68] sm:$0xf]
    %v2994 = vld [vmem:[%s5 + $0x6c] sm:$0xf]
    %v2995 = vld [vmem:[%s5 + $0x70] sm:$0xf]
    %v2996 = vld [vmem:[%s5 + $0x74] sm:$0xf]
    %v2997 = vld [vmem:[%s5 + $0x78] sm:$0xf]
    %v2998 = vld [vmem:[%s5 + $0x7c] sm:$0xf]
    %v2999 = vld [vmem:[%s5 + $0x80] sm:$0xf]
    %v3000 = vld [vmem:[%s5 + $0x84] sm:$0xf]
    %v3001 = vld [vmem:[%s5 + $0x88] sm:$0xf]
    %v3002 = vld [vmem:[%s5 + $0x8c] sm:$0xf]
    %v3003 = vld [vmem:[%s5 + $0x90] sm:$0xf]
    %v3004 = vld [vmem:[%s5 + $0x94] sm:$0xf]
    %v3005 = vld [vmem:[%s5 + $0x98] sm:$0xf]
    %v3006 = vld [vmem:[%s5 + $0x9c] sm:$0xf]
    %v3007 = vld [vmem:[%s5 + $0xa0] sm:$0xf]
    %v3008 = vld [vmem:[%s5 + $0xa4] sm:$0xf]
    %v3009 = vld [vmem:[%s5 + $0xa8] sm:$0xf]
    %v3010 = vld [vmem:[%s5 + $0xac] sm:$0xf]
    %v3011 = vld [vmem:[%s5 + $0xb0] sm:$0xf]
    %v3012 = vld [vmem:[%s5 + $0xb4] sm:$0xf]
    %v3013 = vld [vmem:[%s5 + $0xb8] sm:$0xf]
    %v3014 = vld [vmem:[%s5 + $0xbc] sm:$0xf]
    %v3015 = vld [vmem:[%s5 + $0xc0] sm:$0xf]
    %v3016 = vld [vmem:[%s5 + $0xc4] sm:$0xf]
    %v3017 = vld [vmem:[%s5 + $0xc8] sm:$0xf]
    %v3018 = vld [vmem:[%s5 + $0xcc] sm:$0xf]
    %v3019 = vld [vmem:[%s5 + $0xd0] sm:$0xf]
    %v3020 = vld [vmem:[%s5 + $0xd4] sm:$0xf]
    %v3021 = vld [vmem:[%s5 + $0xd8] sm:$0xf]
    %v3022 = vld [vmem:[%s5 + $0xdc] sm:$0xf]
    %v3023 = vld [vmem:[%s5 + $0xe0] sm:$0xf]
    %v3024 = vld [vmem:[%s5 + $0xe4] sm:$0xf]
    %v3025 = vld [vmem:[%s5 + $0xe8] sm:$0xf]
    %v3026 = vld [vmem:[%s5 + $0xec] sm:$0xf]
    %v3027 = vld [vmem:[%s5 + $0xf0] sm:$0xf]
    %v3028 = vld [vmem:[%s5 + $0xf4] sm:$0xf]
    %v3029 = vld [vmem:[%s5 + $0xf8] sm:$0xf]
    %v3030 = vld [vmem:[%s5 + $0xfc] sm:$0xf]
    %v3031 = vld [vmem:[%s6] sm:$0x1]
    %v3033 = vlaneseq
    %v3034 = vshrl.u32 %v3033, 7
    %v3035 = vsub.s32 0, %v3034
    %v3036 = vrot.slane %v3031, %v3035
    %v3102 = vunpack.c.l.b16 %v2967
    %v3103 = vunpack.c.l.b16 %v2968
    %v3104 = vunpack.c.l.b16 %v2969
    %v3105 = vunpack.c.l.b16 %v2970
    %v3106 = vunpack.c.l.b16 %v2971
    %v3107 = vunpack.c.l.b16 %v2972
    %v3108 = vunpack.c.l.b16 %v2973
    %v3109 = vunpack.c.l.b16 %v2974
    %v3110 = vunpack.c.l.b16 %v2975
    %v3111 = vunpack.c.l.b16 %v2976
    %v3112 = vunpack.c.l.b16 %v2977
    %v3113 = vunpack.c.l.b16 %v2978
    %v3114 = vunpack.c.l.b16 %v2979
    %v3115 = vunpack.c.l.b16 %v2980
    %v3116 = vunpack.c.l.b16 %v2981
    %v3117 = vunpack.c.l.b16 %v2982
    %v3118 = vunpack.c.l.b16 %v2983
    %v3119 = vunpack.c.l.b16 %v2984
    %v3120 = vunpack.c.l.b16 %v2985
    %v3121 = vunpack.c.l.b16 %v2986
    %v3122 = vunpack.c.l.b16 %v2987
    %v3123 = vunpack.c.l.b16 %v2988
    %v3124 = vunpack.c.l.b16 %v2989
    %v3125 = vunpack.c.l.b16 %v2990
    %v3126 = vunpack.c.l.b16 %v2991
    %v3127 = vunpack.c.l.b16 %v2992
    %v3128 = vunpack.c.l.b16 %v2993
    %v3129 = vunpack.c.l.b16 %v2994
    %v3130 = vunpack.c.l.b16 %v2995
    %v3131 = vunpack.c.l.b16 %v2996
    %v3132 = vunpack.c.l.b16 %v2997
    %v3133 = vunpack.c.l.b16 %v2998
    %v3134 = vunpack.c.l.b16 %v2999
    %v3135 = vunpack.c.l.b16 %v3000
    %v3136 = vunpack.c.l.b16 %v3001
    %v3137 = vunpack.c.l.b16 %v3002
    %v3138 = vunpack.c.l.b16 %v3003
    %v3139 = vunpack.c.l.b16 %v3004
    %v3140 = vunpack.c.l.b16 %v3005
    %v3141 = vunpack.c.l.b16 %v3006
    %v3142 = vunpack.c.l.b16 %v3007
    %v3143 = vunpack.c.l.b16 %v3008
    %v3144 = vunpack.c.l.b16 %v3009
    %v3145 = vunpack.c.l.b16 %v3010
    %v3146 = vunpack.c.l.b16 %v3011
    %v3147 = vunpack.c.l.b16 %v3012
    %v3148 = vunpack.c.l.b16 %v3013
    %v3149 = vunpack.c.l.b16 %v3014
    %v3150 = vunpack.c.l.b16 %v3015
    %v3151 = vunpack.c.l.b16 %v3016
    %v3152 = vunpack.c.l.b16 %v3017
    %v3153 = vunpack.c.l.b16 %v3018
    %v3154 = vunpack.c.l.b16 %v3019
    %v3155 = vunpack.c.l.b16 %v3020
    %v3156 = vunpack.c.l.b16 %v3021
    %v3157 = vunpack.c.l.b16 %v3022
    %v3158 = vunpack.c.l.b16 %v3023
    %v3159 = vunpack.c.l.b16 %v3024
    %v3160 = vunpack.c.l.b16 %v3025
    %v3161 = vunpack.c.l.b16 %v3026
    %v3162 = vunpack.c.l.b16 %v3027
    %v3163 = vunpack.c.l.b16 %v3028
    %v3164 = vunpack.c.l.b16 %v3029
    %v3165 = vunpack.c.l.b16 %v3030
    %v3166 = vpack.c.b16 %v3103, %v3102
    %v3167 = vpack.c.b16 %v3105, %v3104
    %v3168 = vpack.c.b16 %v3107, %v3106
    %v3169 = vpack.c.b16 %v3109, %v3108
    %v3170 = vpack.c.b16 %v3111, %v3110
    %v3171 = vpack.c.b16 %v3113, %v3112
    %v3172 = vpack.c.b16 %v3115, %v3114
    %v3173 = vpack.c.b16 %v3117, %v3116
    %v3174 = vpack.c.b16 %v3119, %v3118
    %v3175 = vpack.c.b16 %v3121, %v3120
    %v3176 = vpack.c.b16 %v3123, %v3122
    %v3177 = vpack.c.b16 %v3125, %v3124
    %v3178 = vpack.c.b16 %v3127, %v3126
    %v3179 = vpack.c.b16 %v3129, %v3128
    %v3180 = vpack.c.b16 %v3131, %v3130
    %v3181 = vpack.c.b16 %v3133, %v3132
    %v3182 = vpack.c.b16 %v3135, %v3134
    %v3183 = vpack.c.b16 %v3137, %v3136
    %v3184 = vpack.c.b16 %v3139, %v3138
    %v3185 = vpack.c.b16 %v3141, %v3140
    %v3186 = vpack.c.b16 %v3143, %v3142
    %v3187 = vpack.c.b16 %v3145, %v3144
    %v3188 = vpack.c.b16 %v3147, %v3146
    %v3189 = vpack.c.b16 %v3149, %v3148
    %v3190 = vpack.c.b16 %v3151, %v3150
    %v3191 = vpack.c.b16 %v3153, %v3152
    %v3192 = vpack.c.b16 %v3155, %v3154
    %v3193 = vpack.c.b16 %v3157, %v3156
    %v3194 = vpack.c.b16 %v3159, %v3158
    %v3195 = vpack.c.b16 %v3161, %v3160
    %v3196 = vpack.c.b16 %v3163, %v3162
    %v3197 = vpack.c.b16 %v3165, %v3164
    %3230 = vmatprep.subr.bf16.mxu0 0
    %3231 = vmatpush1.bf16.msra.mxu0 %v3166
    %3232 = vmatprep.subr.bf16.mxu0 0
    %3233 = vmatpush1.bf16.msra.mxu0 %v3167
    %3234 = vmatprep.subr.bf16.mxu0 0
    %3235 = vmatpush1.bf16.msra.mxu0 %v3168
    %3236 = vmatprep.subr.bf16.mxu0 0
    %3237 = vmatpush1.bf16.msra.mxu0 %v3169
    %3238 = vmatprep.subr.bf16.mxu0 0
    %3239 = vmatpush1.bf16.msra.mxu0 %v3170
    %3240 = vmatprep.subr.bf16.mxu0 0
    %3241 = vmatpush1.bf16.msra.mxu0 %v3171
    %3242 = vmatprep.subr.bf16.mxu0 0
    %3243 = vmatpush1.bf16.msra.mxu0 %v3172
    %3244 = vmatprep.subr.bf16.mxu0 0
    %3245 = vmatpush1.bf16.msra.mxu0 %v3173
    %3246 = vmatprep.subr.bf16.mxu0 0
    %3247 = vmatpush1.bf16.msra.mxu0 %v3174
    %3248 = vmatprep.subr.bf16.mxu0 0
    %3249 = vmatpush1.bf16.msra.mxu0 %v3175
    %3250 = vmatprep.subr.bf16.mxu0 0
    %3251 = vmatpush1.bf16.msra.mxu0 %v3176
    %3252 = vmatprep.subr.bf16.mxu0 0
    %3253 = vmatpush1.bf16.msra.mxu0 %v3177
    %3254 = vmatprep.subr.bf16.mxu0 0
    %3255 = vmatpush1.bf16.msra.mxu0 %v3178
    %3256 = vmatprep.subr.bf16.mxu0 0
    %3257 = vmatpush1.bf16.msra.mxu0 %v3179
    %3258 = vmatprep.subr.bf16.mxu0 0
    %3259 = vmatpush1.bf16.msra.mxu0 %v3180
    %3260 = vmatprep.subr.bf16.mxu0 0
    %3261 = vmatpush1.bf16.msra.mxu0 %v3181
    %3262 = vmatprep.mubr.bf16.mxu0 %v2964
    %3263 = vmatmul.mubr.bf16.gmra.mrb[0].mxu0 %v2963
    %v3264 = vpop.f32.mrb[0].mxu0
    %v3265 = vadd.f32 %v3036, %v3264
    %v3266 = vpop.f32.mrb[0].mxu0
    %v3267 = vpop.f32.mrb[0].mxu0
    %v3268 = vadd.f32 %v3036, %v3267
    %v3269 = vpop.f32.mrb[0].mxu0
    %3270 = vdwg.mxu0
    %3271 = vmatprep.subr.bf16.mxu0 0
    %3272 = vmatpush1.bf16.msra.mxu0 %v3182
    %3273 = vmatprep.subr.bf16.mxu0 0
    %3274 = vmatpush1.bf16.msra.mxu0 %v3183
    %3275 = vmatprep.subr.bf16.mxu0 0
    %3276 = vmatpush1.bf16.msra.mxu0 %v3184
    %3277 = vmatprep.subr.bf16.mxu0 0
    %3278 = vmatpush1.bf16.msra.mxu0 %v3185
    %3279 = vmatprep.subr.bf16.mxu0 0
    %3280 = vmatpush1.bf16.msra.mxu0 %v3186
    %3281 = vmatprep.subr.bf16.mxu0 0
    %3282 = vmatpush1.bf16.msra.mxu0 %v3187
    %3283 = vmatprep.subr.bf16.mxu0 0
    %3284 = vmatpush1.bf16.msra.mxu0 %v3188
    %3285 = vmatprep.subr.bf16.mxu0 0
    %3286 = vmatpush1.bf16.msra.mxu0 %v3189
    %3287 = vmatprep.subr.bf16.mxu0 0
    %3288 = vmatpush1.bf16.msra.mxu0 %v3190
    %3289 = vmatprep.subr.bf16.mxu0 0
    %3290 = vmatpush1.bf16.msra.mxu0 %v3191
    %3291 = vmatprep.subr.bf16.mxu0 0
    %3292 = vmatpush1.bf16.msra.mxu0 %v3192
    %3293 = vmatprep.subr.bf16.mxu0 0
    %3294 = vmatpush1.bf16.msra.mxu0 %v3193
    %3295 = vmatprep.subr.bf16.mxu0 0
    %3296 = vmatpush1.bf16.msra.mxu0 %v3194
    %3297 = vmatprep.subr.bf16.mxu0 0
    %3298 = vmatpush1.bf16.msra.mxu0 %v3195
    %3299 = vmatprep.subr.bf16.mxu0 0
    %3300 = vmatpush1.bf16.msra.mxu0 %v3196
    %3301 = vmatprep.subr.bf16.mxu0 0
    %3302 = vmatpush1.bf16.msra.mxu0 %v3197
    %3303 = vmatprep.mubr.bf16.mxu0 %v2966
    %3304 = vmatmul.mubr.bf16.gmra.mrb[0].mxu0 %v2965
    %v3305 = vpop.f32.mrb[0].mxu0
    %v3306 = vadd.f32 %v3265, %v3305
    %v3307 = vpop.f32.mrb[0].mxu0
    %v3308 = vpop.f32.mrb[0].mxu0
    %v3309 = vadd.f32 %v3268, %v3308
    %v3310 = vpop.f32.mrb[0].mxu0
    %3311 = vdwg.mxu0
    %3312 = vst [vmem:[%s7] sm:$0xff] %v3306
    %3313 = vst [vmem:[%s7 + $0x8] sm:$0xff] %v3309
    // Predicated region
    $region38: #{fc_critic_forward.1} parent=1 // pred_check
      _
    $region39: #{fc_critic_forward.1} parent=1 // pred_check_branch
      %3315 = sbr.rel (0) target = $region41
    $region40: #{fc_critic_forward.1} parent=1 // pred_region
      _
    $region41: #{fc_critic_forward.1} parent=1 // pred_fallthru
      _
    // Predicated region
    $region42: #{fc_critic_forward.1} parent=1 // pred_check
      _
    $region43: #{fc_critic_forward.1} parent=1 // pred_check_branch
      %3317 = sbr.rel (0) target = $region45
    $region44: #{fc_critic_forward.1} parent=1 // pred_region
      _
    $region45: #{fc_critic_forward.1} parent=1 // pred_fallthru
      _
    %3318 = vsyncpa [#allocation3], 1
    %3319 = vsyncpa [#allocation5], 1

</llo_original>
